<compile_context>
chip_gen: v7x
topology: tpu7x:2x2x1
jax: 0.10.0
libtpu: 0.0.40
codegen_flags: <defaults>
</compile_context>

<pallas_src>
import functools

import jax
import jax.numpy as jnp
import numpy as np
from jax.experimental import pallas as pl
from jax.experimental.pallas import tpu as pltpu

EPS = 1e-5
LANE = 128


def _fused_kernel(x_ref, pp_ref, w_ref, bfc_ref, o_ref):
    # Shapes (K = Cout * P, P = H*W):
    #   x:   (1, K)     f32   input pixel row tiled Cout times,
    #                         x[0, c*P + p] = image pixel p   (Cin == 1)
    #   pp:  (3, K)     f32   per-channel params expanded along K:
    #                         row0 = wconv*gamma, row1 = wconv^2, row2 = beta
    #   w:   (K, Fpad)  bf16  fc weight, w[c*P+p, f] = W_fc[f, c*P+p]
    #   bfc: (1, Fpad)  f32   fc bias (zero padded to a full lane width)
    #   o:   (1, Fpad)  f32
    x = x_ref[...]                                            # (1, K)

    # BatchNorm (training-mode batch stats) folded with the Cin==1 1x1 conv.
    # Stats over the Cout-tiled row equal stats over the original P pixels.
    mean = jnp.mean(x, axis=1, keepdims=True)                 # (1, 1)
    xc = x - mean
    var = jnp.mean(xc * xc, axis=1, keepdims=True)            # (1, 1)

    pp = pp_ref[...]                                          # (3, K)
    wg = pp[0:1, :]                                           # wconv * gamma
    w2 = pp[1:2, :]                                           # wconv^2
    beta = pp[2:3, :]
    scale = wg * jax.lax.rsqrt(w2 * var + EPS)                # (1, K)
    a = jnp.maximum(scale * xc + beta, 0.0)                   # (1, K) f32

    # Single MXU contraction over K = Cout*P (flatten order c*P + p preserved
    # by construction), bf16 inputs, f32 accumulation.
    o_ref[...] = (
        jnp.dot(a.astype(w_ref.dtype), w_ref[...],
                preferred_element_type=jnp.float32)
        + bfc_ref[...])


def prepare_params(params, h, w):
    """One-time re-layout of PyTorch-style parameters into kernel layout."""
    p = h * w
    wconv = params["wconv"]                  # (Cout, 1, 1, 1)
    cout = wconv.shape[0]
    wfc = params["wfc"]                      # (Fout, Cout*P)
    fout = wfc.shape[0]
    fpad = ((fout + LANE - 1) // LANE) * LANE

    wc = wconv.reshape(cout).astype(jnp.float32)
    g = params["gamma"].astype(jnp.float32)
    beta = params["beta"].astype(jnp.float32)
    # Note: the conv bias cancels exactly inside BatchNorm -> not needed.

    # Expand per-channel params along the flattened K axis (index = c*P + p)
    # and pack into a single (3, K) array -> one DMA instead of five.
    pp = jnp.stack([
        jnp.repeat(wc * g, p),
        jnp.repeat(wc * wc, p),
        jnp.repeat(beta, p),
    ], axis=0).astype(jnp.float32)           # (3, Cout*P)

    # wfc[f, k] -> w2d[k, f]; Fout zero-padded to a full lane width; stored
    # bf16 (MXU-native, halves HBM traffic; accumulation stays f32).
    w2d = jnp.pad(wfc.T.astype(jnp.float32), ((0, 0), (0, fpad - fout)))
    w2d = w2d.astype(jnp.bfloat16)           # (Cout*P, Fpad)

    bfc = jnp.pad(params["bfc"].astype(jnp.float32),
                  (0, fpad - fout)).reshape(1, fpad)
    return {"pp": pp, "wfc2d": w2d, "bfc": bfc}


@functools.partial(jax.jit, static_argnames=("fout",))
def model_forward(x, prepped, *, fout):
    # x: (1, 1, H, W) float32
    n, cin, h, w = x.shape
    assert n == 1 and cin == 1
    p = h * w
    k = prepped["pp"].shape[1]
    cout = k // p
    fpad = prepped["bfc"].shape[1]

    # Tile the pixel row Cout times so the activation is born in the
    # flattened (1, Cout*P) layout (no in-kernel relayout); 16 KiB, negligible.
    x_rep = jnp.tile(x.reshape(1, p).astype(jnp.float32), (1, cout))  # (1, K)

    vmem = pl.BlockSpec(memory_space=pltpu.MemorySpace.VMEM)
    out_pad = pl.pallas_call(
        _fused_kernel,
        out_shape=jax.ShapeDtypeStruct((1, fpad), jnp.float32),
        in_specs=[vmem, vmem, vmem, vmem],
        out_specs=vmem,
    )(x_rep, prepped["pp"], prepped["wfc2d"], prepped["bfc"])

    return out_pad[:, :fout]                               # (1, Fout)


def _reference(x, params):
    n, cin, h, w = x.shape
    wconv = params["wconv"].reshape(-1, cin)
    y = jnp.einsum("oc,nchw->nohw", wconv, x) + params["bconv"][None, :, None, None]
    mean = y.mean(axis=(0, 2, 3), keepdims=True)
    var = y.var(axis=(0, 2, 3), keepdims=True)             # biased, as in BN
    yn = (y - mean) / jnp.sqrt(var + EPS)
    yn = yn * params["gamma"][None, :, None, None] + params["beta"][None, :, None, None]
    a = jnp.maximum(yn, 0.0)
    return a.reshape(1, -1) @ params["wfc"].T + params["bfc"][None, :]


if __name__ == "__main__":
    # Small shapes consistent with the module's forward (Cin must be 1).
    CIN, COUT, H, W, FOUT = 1, 16, 16, 16, 32
    key = jax.random.PRNGKey(0)
    ks = jax.random.split(key, 7)

    params = {
        "wconv": jax.random.normal(ks[0], (COUT, CIN, 1, 1), jnp.float32) * 0.5,
        "bconv": jax.random.normal(ks[1], (COUT,), jnp.float32) * 0.1,
        "gamma": 1.0 + 0.1 * jax.random.normal(ks[2], (COUT,), jnp.float32),
        "beta": 0.1 * jax.random.normal(ks[3], (COUT,), jnp.float32),
        "wfc": jax.random.normal(ks[4], (FOUT, COUT * H * W), jnp.float32) * 0.02,
        "bfc": jax.random.normal(ks[5], (FOUT,), jnp.float32) * 0.1,
    }
    x = jax.random.normal(ks[6], (1, CIN, H, W), jnp.float32)

    prepped = jax.tree_util.tree_map(jax.block_until_ready,
                                     prepare_params(params, H, W))

    out = jax.block_until_ready(model_forward(x, prepped, fout=FOUT))
    ref = jax.block_until_ready(_reference(x, params))

    assert out.shape == (1, FOUT), out.shape
    np.testing.assert_allclose(np.asarray(out), np.asarray(ref),
                               rtol=2e-2, atol=2e-2)
    print("KERNEL_OK")
</pallas_src>

<mosaic_0001>
module attributes {stable_mosaic.version = 11 : i64} {
  func.func @_fused_kernel(%arg0: memref<1x4096xf32, #tpu.memory_space<vmem>>, %arg1: memref<3x4096xf32, #tpu.memory_space<vmem>>, %arg2: memref<4096x128xbf16, #tpu.memory_space<vmem>>, %arg3: memref<1x128xf32, #tpu.memory_space<vmem>>, %arg4: memref<1x128xf32, #tpu.memory_space<vmem>>) attributes {dimension_semantics = [], scalar_prefetch = 0 : i64, scratch_operands = 0 : i64, tpu.core_type = #tpu.core_type<tc>} {
    %c0 = arith.constant 0 : index
    %c0_0 = arith.constant 0 : index
    %0 = vector.load %arg0[%c0, %c0_0] : memref<1x4096xf32, #tpu.memory_space<vmem>>, vector<1x4096xf32>
    %cst = arith.constant dense<0.000000e+00> : vector<1xf32>
    %1 = vector.multi_reduction <add>, %0, %cst [1] : vector<1x4096xf32> to vector<1xf32>
    %2 = vector.shape_cast %1 : vector<1xf32> to vector<1x1xf32>
    %cst_1 = arith.constant 4.096000e+03 : f32
    %3 = vector.broadcast %cst_1 : f32 to vector<1x1xf32>
    %4 = arith.divf %2, %3 : vector<1x1xf32>
    %5 = vector.broadcast %4 : vector<1x1xf32> to vector<1x4096xf32>
    %6 = arith.subf %0, %5 : vector<1x4096xf32>
    %7 = arith.mulf %6, %6 : vector<1x4096xf32>
    %cst_2 = arith.constant dense<0.000000e+00> : vector<1xf32>
    %8 = vector.multi_reduction <add>, %7, %cst_2 [1] : vector<1x4096xf32> to vector<1xf32>
    %9 = vector.shape_cast %8 : vector<1xf32> to vector<1x1xf32>
    %cst_3 = arith.constant 4.096000e+03 : f32
    %10 = vector.broadcast %cst_3 : f32 to vector<1x1xf32>
    %11 = arith.divf %9, %10 : vector<1x1xf32>
    %c0_4 = arith.constant 0 : index
    %c0_5 = arith.constant 0 : index
    %12 = vector.load %arg1[%c0_4, %c0_5] : memref<3x4096xf32, #tpu.memory_space<vmem>>, vector<3x4096xf32>
    %13 = vector.extract_strided_slice %12 {offsets = [0, 0], sizes = [1, 4096], strides = [1, 1]} : vector<3x4096xf32> to vector<1x4096xf32>
    %14 = vector.extract_strided_slice %12 {offsets = [1, 0], sizes = [1, 4096], strides = [1, 1]} : vector<3x4096xf32> to vector<1x4096xf32>
    %15 = vector.extract_strided_slice %12 {offsets = [2, 0], sizes = [1, 4096], strides = [1, 1]} : vector<3x4096xf32> to vector<1x4096xf32>
    %16 = vector.broadcast %11 : vector<1x1xf32> to vector<1x4096xf32>
    %17 = arith.mulf %14, %16 : vector<1x4096xf32>
    %cst_6 = arith.constant 9.99999974E-6 : f32
    %18 = vector.broadcast %cst_6 : f32 to vector<1x4096xf32>
    %19 = arith.addf %17, %18 : vector<1x4096xf32>
    %20 = math.rsqrt %19 : vector<1x4096xf32>
    %21 = arith.mulf %13, %20 : vector<1x4096xf32>
    %22 = arith.mulf %21, %6 : vector<1x4096xf32>
    %23 = arith.addf %22, %15 : vector<1x4096xf32>
    %cst_7 = arith.constant 0.000000e+00 : f32
    %24 = vector.broadcast %cst_7 : f32 to vector<1x4096xf32>
    %25 = arith.maximumf %23, %24 : vector<1x4096xf32>
    %26 = arith.truncf %25 : vector<1x4096xf32> to vector<1x4096xbf16>
    %c0_8 = arith.constant 0 : index
    %c0_9 = arith.constant 0 : index
    %27 = vector.load %arg2[%c0_8, %c0_9] : memref<4096x128xbf16, #tpu.memory_space<vmem>>, vector<4096x128xbf16>
    %cst_10 = arith.constant dense<0.000000e+00> : vector<1x128xf32>
    %28 = tpu.matmul %26, %27, %cst_10 {dimension_numbers = #tpu.dot_dimension_numbers<[1], [0], [0], [1], [0, 0, 1, 1], [], []>} : vector<1x4096xbf16>, vector<4096x128xbf16>, vector<1x128xf32> -> vector<1x128xf32>
    %c0_11 = arith.constant 0 : index
    %c0_12 = arith.constant 0 : index
    %29 = vector.load %arg3[%c0_11, %c0_12] : memref<1x128xf32, #tpu.memory_space<vmem>>, vector<1x128xf32>
    %30 = arith.addf %28, %29 : vector<1x128xf32>
    %c0_13 = arith.constant 0 : index
    %c0_14 = arith.constant 0 : index
    %31 = vector.load %arg4[%c0_13, %c0_14] : memref<1x128xf32, #tpu.memory_space<vmem>>, vector<1x128xf32>
    tpu.vector_store %arg4[%c0_13, %c0_14], %30 {strides = array<i32>} : memref<1x128xf32, #tpu.memory_space<vmem>>, vector<1x128xf32>,
    return
  }
}

</mosaic_0001>

<llo_original>
// kernel: model_forward.1
$region0: #{model_forward.1}
  #allocation0 [shape = 'u32[]', space=smem, size = 0x4, offset = 0x4, fixed_abs, tag = 'smem constant byte address 0x4 - core index']
  #allocation1 [shape = 'u32[144,128]{1,0:T(1,128)}', space=vmem, size = 0x12000, scoped, tag = 'internal scratch']
  %s0 = inlined_call_operand.vmem [shape: f32[1,4096], index: 0, kind: input, shape index: {}]
  %s1 = inlined_call_operand.hbm [shape: f32[3,4096], index: 1, kind: input, shape index: {}]
  %s2 = inlined_call_operand.hbm [shape: bf16[4096,128], index: 2, kind: input, shape index: {}]
  %s3 = inlined_call_operand.vmem [shape: f32[1,128], index: 3, kind: input, shape index: {}]
  %s4 = inlined_call_operand.hbm [shape: f32[1,128], index: 4, kind: output, shape index: {}]
  %s5 = sld [smem:[#allocation0]]
  $region34: #{model_forward.1} parent=0
    _
  %s7 = ssub.s32 1, %s5
  %s8 = scalar_select 0, %s7, %s5
  $region1: #{model_forward.1} parent=0
    #allocation2 [shape = 'u8[65536]{0}', space=vmem, size = 0x10000, scoped, tag = 'input window, operand 1, single buffered']
    #allocation3 [shape = 's32[1]{0}', space=sflag, size = 0x4, scoped, tag = 'scoped memory for model_forward.1']
    #allocation4 [shape = 's32[1]{0}', space=sflag, size = 0x4, scoped, tag = 'scoped memory for model_forward.1']
    #allocation5 [shape = 'u8[1048576]{0}', space=vmem, size = 0x100000, scoped, tag = 'input window, operand 2, single buffered']
    #allocation6 [shape = 's32[1]{0}', space=sflag, size = 0x4, scoped, tag = 'scoped memory for model_forward.1']
    #allocation7 [shape = 'u8[512]{0}', space=vmem, size = 0x400, scoped, tag = 'output window, operand 0, single buffered']
    %9 = vsyncpa [#allocation3], 0
    %10 = vsyncpa [#allocation6], 0
    %11 = vsyncpa [#allocation4], 0
    // Predicated region
    $region2: #{model_forward.1} parent=1 // pred_check
      _
    $region3: #{model_forward.1} parent=1 // pred_check_branch
      %13 = sbr.rel (0) target = $region5
    $region4: #{model_forward.1} parent=1 // pred_region
      _
    $region5: #{model_forward.1} parent=1 // pred_fallthru
      _
    // Predicated region
    $region6: #{model_forward.1} parent=1 // pred_check
      _
    $region7: #{model_forward.1} parent=1 // pred_check_branch
      %15 = sbr.rel (0) target = $region9
    $region8: #{model_forward.1} parent=1 // pred_region
      %s17 = ssub.s32 2048, 2048
      %18 = vsyncadd [#allocation3], %s17
      %s20 = sshll.u32 [#allocation2], 4
      %s21 = int_to_ptr.vmem [resolvable:$true] %s20
      %23 = dma.hbm_to_vmem [thread:$0]  %s1, 2048, %s21, [#allocation3]
    $region9: #{model_forward.1} parent=1 // pred_fallthru
      _
    // Predicated region
    $region10: #{model_forward.1} parent=1 // pred_check
      _
    $region11: #{model_forward.1} parent=1 // pred_check_branch
      %25 = sbr.rel (0) target = $region13
    $region12: #{model_forward.1} parent=1 // pred_region
      %s27 = ssub.s32 32768, 32768
      %28 = vsyncadd [#allocation6], %s27
      %s29 = sshll.u32 [#allocation5], 4
      %s30 = int_to_ptr.vmem [resolvable:$true] %s29
      %35 = dma.hbm_to_vmem [thread:$0]  %s2, 32768, %s30, [#allocation6], 64, 64, 4
    $region13: #{model_forward.1} parent=1 // pred_fallthru
      _
    // Predicated region
    $region14: #{model_forward.1} parent=1 // pred_check
      _
    $region15: #{model_forward.1} parent=1 // pred_check_branch
      %37 = sbr.rel (0) target = $region17
    $region16: #{model_forward.1} parent=1 // pred_region
      _
    $region17: #{model_forward.1} parent=1 // pred_fallthru
      _
    // Predicated region
    $region18: #{model_forward.1} parent=1 // pred_check
      _
    $region19: #{model_forward.1} parent=1 // pred_check_branch
      %39 = sbr.rel (0) target = $region21
    $region20: #{model_forward.1} parent=1 // pred_region
      %40 = dma.done [#allocation3], 2048
    $region21: #{model_forward.1} parent=1 // pred_fallthru
      _
    // Predicated region
    $region22: #{model_forward.1} parent=1 // pred_check
      _
    $region23: #{model_forward.1} parent=1 // pred_check_branch
      %42 = sbr.rel (0) target = $region25
    $region24: #{model_forward.1} parent=1 // pred_region
      %43 = dma.done [#allocation6], 32768
    $region25: #{model_forward.1} parent=1 // pred_fallthru
      _
    %v45 = vld [vmem:[%s0] sm:$0xff]
    %v46 = vld [vmem:[%s0 + $0x8] sm:$0xff]
    %v47 = vld [vmem:[%s0 + $0x10] sm:$0xff]
    %v48 = vld [vmem:[%s0 + $0x18] sm:$0xff]
    %v53 = vlaneseq
    %v54 = vshrl.u32 %v53, 7
    %v55 = vsub.s32 0, %v54
    %v56 = vrot.slane %v45, %v55
    %v57 = vlaneseq
    %v58 = vshrl.u32 %v57, 7
    %v59 = vsub.s32 1, %v58
    %v60 = vrot.slane %v45, %v59
    %v61 = vlaneseq
    %v62 = vshrl.u32 %v61, 7
    %v63 = vsub.s32 2, %v62
    %v64 = vrot.slane %v45, %v63
    %v65 = vlaneseq
    %v66 = vshrl.u32 %v65, 7
    %v67 = vsub.s32 3, %v66
    %v68 = vrot.slane %v45, %v67
    %v69 = vlaneseq
    %v70 = vshrl.u32 %v69, 7
    %v71 = vsub.s32 4, %v70
    %v72 = vrot.slane %v45, %v71
    %v73 = vlaneseq
    %v74 = vshrl.u32 %v73, 7
    %v75 = vsub.s32 5, %v74
    %v76 = vrot.slane %v45, %v75
    %v77 = vlaneseq
    %v78 = vshrl.u32 %v77, 7
    %v79 = vsub.s32 6, %v78
    %v80 = vrot.slane %v45, %v79
    %v81 = vlaneseq
    %v82 = vshrl.u32 %v81, 7
    %v83 = vsub.s32 7, %v82
    %v84 = vrot.slane %v45, %v83
    %v85 = vlaneseq
    %v86 = vshrl.u32 %v85, 7
    %v87 = vsub.s32 0, %v86
    %v88 = vrot.slane %v46, %v87
    %v89 = vlaneseq
    %v90 = vshrl.u32 %v89, 7
    %v91 = vsub.s32 1, %v90
    %v92 = vrot.slane %v46, %v91
    %v93 = vlaneseq
    %v94 = vshrl.u32 %v93, 7
    %v95 = vsub.s32 2, %v94
    %v96 = vrot.slane %v46, %v95
    %v97 = vlaneseq
    %v98 = vshrl.u32 %v97, 7
    %v99 = vsub.s32 3, %v98
    %v100 = vrot.slane %v46, %v99
    %v101 = vlaneseq
    %v102 = vshrl.u32 %v101, 7
    %v103 = vsub.s32 4, %v102
    %v104 = vrot.slane %v46, %v103
    %v105 = vlaneseq
    %v106 = vshrl.u32 %v105, 7
    %v107 = vsub.s32 5, %v106
    %v108 = vrot.slane %v46, %v107
    %v109 = vlaneseq
    %v110 = vshrl.u32 %v109, 7
    %v111 = vsub.s32 6, %v110
    %v112 = vrot.slane %v46, %v111
    %v113 = vlaneseq
    %v114 = vshrl.u32 %v113, 7
    %v115 = vsub.s32 7, %v114
    %v116 = vrot.slane %v46, %v115
    %v117 = vlaneseq
    %v118 = vshrl.u32 %v117, 7
    %v119 = vsub.s32 0, %v118
    %v120 = vrot.slane %v47, %v119
    %v121 = vlaneseq
    %v122 = vshrl.u32 %v121, 7
    %v123 = vsub.s32 1, %v122
    %v124 = vrot.slane %v47, %v123
    %v125 = vlaneseq
    %v126 = vshrl.u32 %v125, 7
    %v127 = vsub.s32 2, %v126
    %v128 = vrot.slane %v47, %v127
    %v129 = vlaneseq
    %v130 = vshrl.u32 %v129, 7
    %v131 = vsub.s32 3, %v130
    %v132 = vrot.slane %v47, %v131
    %v133 = vlaneseq
    %v134 = vshrl.u32 %v133, 7
    %v135 = vsub.s32 4, %v134
    %v136 = vrot.slane %v47, %v135
    %v137 = vlaneseq
    %v138 = vshrl.u32 %v137, 7
    %v139 = vsub.s32 5, %v138
    %v140 = vrot.slane %v47, %v139
    %v141 = vlaneseq
    %v142 = vshrl.u32 %v141, 7
    %v143 = vsub.s32 6, %v142
    %v144 = vrot.slane %v47, %v143
    %v145 = vlaneseq
    %v146 = vshrl.u32 %v145, 7
    %v147 = vsub.s32 7, %v146
    %v148 = vrot.slane %v47, %v147
    %v149 = vlaneseq
    %v150 = vshrl.u32 %v149, 7
    %v151 = vsub.s32 0, %v150
    %v152 = vrot.slane %v48, %v151
    %v153 = vlaneseq
    %v154 = vshrl.u32 %v153, 7
    %v155 = vsub.s32 1, %v154
    %v156 = vrot.slane %v48, %v155
    %v157 = vlaneseq
    %v158 = vshrl.u32 %v157, 7
    %v159 = vsub.s32 2, %v158
    %v160 = vrot.slane %v48, %v159
    %v161 = vlaneseq
    %v162 = vshrl.u32 %v161, 7
    %v163 = vsub.s32 3, %v162
    %v164 = vrot.slane %v48, %v163
    %v165 = vlaneseq
    %v166 = vshrl.u32 %v165, 7
    %v167 = vsub.s32 4, %v166
    %v168 = vrot.slane %v48, %v167
    %v169 = vlaneseq
    %v170 = vshrl.u32 %v169, 7
    %v171 = vsub.s32 5, %v170
    %v172 = vrot.slane %v48, %v171
    %v173 = vlaneseq
    %v174 = vshrl.u32 %v173, 7
    %v175 = vsub.s32 6, %v174
    %v176 = vrot.slane %v48, %v175
    %v177 = vlaneseq
    %v178 = vshrl.u32 %v177, 7
    %v179 = vsub.s32 7, %v178
    %v180 = vrot.slane %v48, %v179
    %vm213 = vcmask 1040384
    %v214 = vsel %vm213, %v56, 0.0
    %v215 = vsel %vm213, %v60, 0.0
    %v216 = vadd.f32 %v214, %v215
    %v217 = vsel %vm213, %v64, 0.0
    %v218 = vadd.f32 %v216, %v217
    %v219 = vsel %vm213, %v68, 0.0
    %v220 = vadd.f32 %v218, %v219
    %v221 = vsel %vm213, %v72, 0.0
    %v222 = vadd.f32 %v220, %v221
    %v223 = vsel %vm213, %v76, 0.0
    %v224 = vadd.f32 %v222, %v223
    %v225 = vsel %vm213, %v80, 0.0
    %v226 = vadd.f32 %v224, %v225
    %v227 = vsel %vm213, %v84, 0.0
    %v228 = vadd.f32 %v226, %v227
    %v229 = vsel %vm213, %v88, 0.0
    %v230 = vadd.f32 %v228, %v229
    %v231 = vsel %vm213, %v92, 0.0
    %v232 = vadd.f32 %v230, %v231
    %v233 = vsel %vm213, %v96, 0.0
    %v234 = vadd.f32 %v232, %v233
    %v235 = vsel %vm213, %v100, 0.0
    %v236 = vadd.f32 %v234, %v235
    %v237 = vsel %vm213, %v104, 0.0
    %v238 = vadd.f32 %v236, %v237
    %v239 = vsel %vm213, %v108, 0.0
    %v240 = vadd.f32 %v238, %v239
    %v241 = vsel %vm213, %v112, 0.0
    %v242 = vadd.f32 %v240, %v241
    %v243 = vsel %vm213, %v116, 0.0
    %v244 = vadd.f32 %v242, %v243
    %v245 = vsel %vm213, %v120, 0.0
    %v246 = vadd.f32 %v244, %v245
    %v247 = vsel %vm213, %v124, 0.0
    %v248 = vadd.f32 %v246, %v247
    %v249 = vsel %vm213, %v128, 0.0
    %v250 = vadd.f32 %v248, %v249
    %v251 = vsel %vm213, %v132, 0.0
    %v252 = vadd.f32 %v250, %v251
    %v253 = vsel %vm213, %v136, 0.0
    %v254 = vadd.f32 %v252, %v253
    %v255 = vsel %vm213, %v140, 0.0
    %v256 = vadd.f32 %v254, %v255
    %v257 = vsel %vm213, %v144, 0.0
    %v258 = vadd.f32 %v256, %v257
    %v259 = vsel %vm213, %v148, 0.0
    %v260 = vadd.f32 %v258, %v259
    %v261 = vsel %vm213, %v152, 0.0
    %v262 = vadd.f32 %v260, %v261
    %v263 = vsel %vm213, %v156, 0.0
    %v264 = vadd.f32 %v262, %v263
    %v265 = vsel %vm213, %v160, 0.0
    %v266 = vadd.f32 %v264, %v265
    %v267 = vsel %vm213, %v164, 0.0
    %v268 = vadd.f32 %v266, %v267
    %v269 = vsel %vm213, %v168, 0.0
    %v270 = vadd.f32 %v268, %v269
    %v271 = vsel %vm213, %v172, 0.0
    %v272 = vadd.f32 %v270, %v271
    %v273 = vsel %vm213, %v176, 0.0
    %v274 = vadd.f32 %v272, %v273
    %v275 = vsel %vm213, %v180, 0.0
    %v276 = vadd.f32 %v274, %v275
    %277 = vadd.xlane.f32.xlu0 %v276
    %v278 = vpop.xlane.xlu0 %277
    %v279 = vrcp.pop 4096.0
    %v280 = vmul.f32 %v278, %v279
    %v282 = vlaneseq
    %v283 = vshrl.u32 %v282, 7
    %v284 = vsub.s32 0, %v283
    %v285 = vrot.slane %v280, %v284
    %v287 = vsub.f32 %v45, %v285
    %v288 = vsub.f32 %v46, %v285
    %v289 = vsub.f32 %v47, %v285
    %v290 = vsub.f32 %v48, %v285
    %v291 = vmul.f32 %v287, %v287
    %v292 = vmul.f32 %v288, %v288
    %v293 = vmul.f32 %v289, %v289
    %v294 = vmul.f32 %v290, %v290
    %v299 = vlaneseq
    %v300 = vshrl.u32 %v299, 7
    %v301 = vsub.s32 0, %v300
    %v302 = vrot.slane %v291, %v301
    %v303 = vlaneseq
    %v304 = vshrl.u32 %v303, 7
    %v305 = vsub.s32 1, %v304
    %v306 = vrot.slane %v291, %v305
    %v307 = vlaneseq
    %v308 = vshrl.u32 %v307, 7
    %v309 = vsub.s32 2, %v308
    %v310 = vrot.slane %v291, %v309
    %v311 = vlaneseq
    %v312 = vshrl.u32 %v311, 7
    %v313 = vsub.s32 3, %v312
    %v314 = vrot.slane %v291, %v313
    %v315 = vlaneseq
    %v316 = vshrl.u32 %v315, 7
    %v317 = vsub.s32 4, %v316
    %v318 = vrot.slane %v291, %v317
    %v319 = vlaneseq
    %v320 = vshrl.u32 %v319, 7
    %v321 = vsub.s32 5, %v320
    %v322 = vrot.slane %v291, %v321
    %v323 = vlaneseq
    %v324 = vshrl.u32 %v323, 7
    %v325 = vsub.s32 6, %v324
    %v326 = vrot.slane %v291, %v325
    %v327 = vlaneseq
    %v328 = vshrl.u32 %v327, 7
    %v329 = vsub.s32 7, %v328
    %v330 = vrot.slane %v291, %v329
    %v331 = vlaneseq
    %v332 = vshrl.u32 %v331, 7
    %v333 = vsub.s32 0, %v332
    %v334 = vrot.slane %v292, %v333
    %v335 = vlaneseq
    %v336 = vshrl.u32 %v335, 7
    %v337 = vsub.s32 1, %v336
    %v338 = vrot.slane %v292, %v337
    %v339 = vlaneseq
    %v340 = vshrl.u32 %v339, 7
    %v341 = vsub.s32 2, %v340
    %v342 = vrot.slane %v292, %v341
    %v343 = vlaneseq
    %v344 = vshrl.u32 %v343, 7
    %v345 = vsub.s32 3, %v344
    %v346 = vrot.slane %v292, %v345
    %v347 = vlaneseq
    %v348 = vshrl.u32 %v347, 7
    %v349 = vsub.s32 4, %v348
    %v350 = vrot.slane %v292, %v349
    %v351 = vlaneseq
    %v352 = vshrl.u32 %v351, 7
    %v353 = vsub.s32 5, %v352
    %v354 = vrot.slane %v292, %v353
    %v355 = vlaneseq
    %v356 = vshrl.u32 %v355, 7
    %v357 = vsub.s32 6, %v356
    %v358 = vrot.slane %v292, %v357
    %v359 = vlaneseq
    %v360 = vshrl.u32 %v359, 7
    %v361 = vsub.s32 7, %v360
    %v362 = vrot.slane %v292, %v361
    %v363 = vlaneseq
    %v364 = vshrl.u32 %v363, 7
    %v365 = vsub.s32 0, %v364
    %v366 = vrot.slane %v293, %v365
    %v367 = vlaneseq
    %v368 = vshrl.u32 %v367, 7
    %v369 = vsub.s32 1, %v368
    %v370 = vrot.slane %v293, %v369
    %v371 = vlaneseq
    %v372 = vshrl.u32 %v371, 7
    %v373 = vsub.s32 2, %v372
    %v374 = vrot.slane %v293, %v373
    %v375 = vlaneseq
    %v376 = vshrl.u32 %v375, 7
    %v377 = vsub.s32 3, %v376
    %v378 = vrot.slane %v293, %v377
    %v379 = vlaneseq
    %v380 = vshrl.u32 %v379, 7
    %v381 = vsub.s32 4, %v380
    %v382 = vrot.slane %v293, %v381
    %v383 = vlaneseq
    %v384 = vshrl.u32 %v383, 7
    %v385 = vsub.s32 5, %v384
    %v386 = vrot.slane %v293, %v385
    %v387 = vlaneseq
    %v388 = vshrl.u32 %v387, 7
    %v389 = vsub.s32 6, %v388
    %v390 = vrot.slane %v293, %v389
    %v391 = vlaneseq
    %v392 = vshrl.u32 %v391, 7
    %v393 = vsub.s32 7, %v392
    %v394 = vrot.slane %v293, %v393
    %v395 = vlaneseq
    %v396 = vshrl.u32 %v395, 7
    %v397 = vsub.s32 0, %v396
    %v398 = vrot.slane %v294, %v397
    %v399 = vlaneseq
    %v400 = vshrl.u32 %v399, 7
    %v401 = vsub.s32 1, %v400
    %v402 = vrot.slane %v294, %v401
    %v403 = vlaneseq
    %v404 = vshrl.u32 %v403, 7
    %v405 = vsub.s32 2, %v404
    %v406 = vrot.slane %v294, %v405
    %v407 = vlaneseq
    %v408 = vshrl.u32 %v407, 7
    %v409 = vsub.s32 3, %v408
    %v410 = vrot.slane %v294, %v409
    %v411 = vlaneseq
    %v412 = vshrl.u32 %v411, 7
    %v413 = vsub.s32 4, %v412
    %v414 = vrot.slane %v294, %v413
    %v415 = vlaneseq
    %v416 = vshrl.u32 %v415, 7
    %v417 = vsub.s32 5, %v416
    %v418 = vrot.slane %v294, %v417
    %v419 = vlaneseq
    %v420 = vshrl.u32 %v419, 7
    %v421 = vsub.s32 6, %v420
    %v422 = vrot.slane %v294, %v421
    %v423 = vlaneseq
    %v424 = vshrl.u32 %v423, 7
    %v425 = vsub.s32 7, %v424
    %v426 = vrot.slane %v294, %v425
    %v459 = vsel %vm213, %v302, 0.0
    %v460 = vsel %vm213, %v306, 0.0
    %v461 = vadd.f32 %v459, %v460
    %v462 = vsel %vm213, %v310, 0.0
    %v463 = vadd.f32 %v461, %v462
    %v464 = vsel %vm213, %v314, 0.0
    %v465 = vadd.f32 %v463, %v464
    %v466 = vsel %vm213, %v318, 0.0
    %v467 = vadd.f32 %v465, %v466
    %v468 = vsel %vm213, %v322, 0.0
    %v469 = vadd.f32 %v467, %v468
    %v470 = vsel %vm213, %v326, 0.0
    %v471 = vadd.f32 %v469, %v470
    %v472 = vsel %vm213, %v330, 0.0
    %v473 = vadd.f32 %v471, %v472
    %v474 = vsel %vm213, %v334, 0.0
    %v475 = vadd.f32 %v473, %v474
    %v476 = vsel %vm213, %v338, 0.0
    %v477 = vadd.f32 %v475, %v476
    %v478 = vsel %vm213, %v342, 0.0
    %v479 = vadd.f32 %v477, %v478
    %v480 = vsel %vm213, %v346, 0.0
    %v481 = vadd.f32 %v479, %v480
    %v482 = vsel %vm213, %v350, 0.0
    %v483 = vadd.f32 %v481, %v482
    %v484 = vsel %vm213, %v354, 0.0
    %v485 = vadd.f32 %v483, %v484
    %v486 = vsel %vm213, %v358, 0.0
    %v487 = vadd.f32 %v485, %v486
    %v488 = vsel %vm213, %v362, 0.0
    %v489 = vadd.f32 %v487, %v488
    %v490 = vsel %vm213, %v366, 0.0
    %v491 = vadd.f32 %v489, %v490
    %v492 = vsel %vm213, %v370, 0.0
    %v493 = vadd.f32 %v491, %v492
    %v494 = vsel %vm213, %v374, 0.0
    %v495 = vadd.f32 %v493, %v494
    %v496 = vsel %vm213, %v378, 0.0
    %v497 = vadd.f32 %v495, %v496
    %v498 = vsel %vm213, %v382, 0.0
    %v499 = vadd.f32 %v497, %v498
    %v500 = vsel %vm213, %v386, 0.0
    %v501 = vadd.f32 %v499, %v500
    %v502 = vsel %vm213, %v390, 0.0
    %v503 = vadd.f32 %v501, %v502
    %v504 = vsel %vm213, %v394, 0.0
    %v505 = vadd.f32 %v503, %v504
    %v506 = vsel %vm213, %v398, 0.0
    %v507 = vadd.f32 %v505, %v506
    %v508 = vsel %vm213, %v402, 0.0
    %v509 = vadd.f32 %v507, %v508
    %v510 = vsel %vm213, %v406, 0.0
    %v511 = vadd.f32 %v509, %v510
    %v512 = vsel %vm213, %v410, 0.0
    %v513 = vadd.f32 %v511, %v512
    %v514 = vsel %vm213, %v414, 0.0
    %v515 = vadd.f32 %v513, %v514
    %v516 = vsel %vm213, %v418, 0.0
    %v517 = vadd.f32 %v515, %v516
    %v518 = vsel %vm213, %v422, 0.0
    %v519 = vadd.f32 %v517, %v518
    %v520 = vsel %vm213, %v426, 0.0
    %v521 = vadd.f32 %v519, %v520
    %522 = vadd.xlane.f32.xlu0 %v521
    %v523 = vpop.xlane.xlu0 %522
    %v524 = vmul.f32 %v523, %v279
    %v525 = vld [vmem:[#allocation2] sm:$0x77]
    %v526 = vld [vmem:[#allocation2 + $0x8] sm:$0x77]
    %v527 = vld [vmem:[#allocation2 + $0x10] sm:$0x77]
    %v528 = vld [vmem:[#allocation2 + $0x18] sm:$0x77]
    %v529 = vld [vmem:[#allocation2 + $0x20] sm:$0x77]
    %v530 = vld [vmem:[#allocation2 + $0x28] sm:$0x77]
    %v531 = vld [vmem:[#allocation2 + $0x30] sm:$0x77]
    %v532 = vld [vmem:[#allocation2 + $0x38] sm:$0x77]
    %v533 = vld [vmem:[#allocation2 + $0x40] sm:$0x77]
    %v534 = vld [vmem:[#allocation2 + $0x48] sm:$0x77]
    %v535 = vld [vmem:[#allocation2 + $0x50] sm:$0x77]
    %v536 = vld [vmem:[#allocation2 + $0x58] sm:$0x77]
    %v537 = vld [vmem:[#allocation2 + $0x60] sm:$0x77]
    %v538 = vld [vmem:[#allocation2 + $0x68] sm:$0x77]
    %v539 = vld [vmem:[#allocation2 + $0x70] sm:$0x77]
    %v540 = vld [vmem:[#allocation2 + $0x78] sm:$0x77]
    %v543 = vunpack.c.l.s4 839922192
    %v544 = vunpack.c.0.s8 %v543
    %v545 = vlaneseq
    %v546 = vshrl.u32 %v545, 7
    %v547 = vsub.s32 %v544, %v546
    %v548 = vrot.slane %v524, %v547
    %v549 = vrot.slane %v548, 7
    %v551 = vmul.f32 %v525, %v549
    %v552 = vmul.f32 %v526, %v549
    %v553 = vmul.f32 %v527, %v549
    %v554 = vmul.f32 %v528, %v549
    %v555 = vmul.f32 %v529, %v549
    %v556 = vmul.f32 %v530, %v549
    %v557 = vmul.f32 %v531, %v549
    %v558 = vmul.f32 %v532, %v549
    %v559 = vmul.f32 %v533, %v549
    %v560 = vmul.f32 %v534, %v549
    %v561 = vmul.f32 %v535, %v549
    %v562 = vmul.f32 %v536, %v549
    %v563 = vmul.f32 %v537, %v549
    %v564 = vmul.f32 %v538, %v549
    %v565 = vmul.f32 %v539, %v549
    %v566 = vmul.f32 %v540, %v549
    %v567 = vadd.f32 %v551, 1e-05
    %v568 = vadd.f32 %v552, 1e-05
    %v569 = vadd.f32 %v553, 1e-05
    %v570 = vadd.f32 %v554, 1e-05
    %v571 = vadd.f32 %v555, 1e-05
    %v572 = vadd.f32 %v556, 1e-05
    %v573 = vadd.f32 %v557, 1e-05
    %v574 = vadd.f32 %v558, 1e-05
    %v575 = vadd.f32 %v559, 1e-05
    %v576 = vadd.f32 %v560, 1e-05
    %v577 = vadd.f32 %v561, 1e-05
    %v578 = vadd.f32 %v562, 1e-05
    %v579 = vadd.f32 %v563, 1e-05
    %v580 = vadd.f32 %v564, 1e-05
    %v581 = vadd.f32 %v565, 1e-05
    %v582 = vadd.f32 %v566, 1e-05
    %v583 = vrsqrt.pop %v567
    %v584 = vrsqrt.pop %v568
    %v585 = vrsqrt.pop %v569
    %v586 = vrsqrt.pop %v570
    %v587 = vrsqrt.pop %v571
    %v588 = vrsqrt.pop %v572
    %v589 = vrsqrt.pop %v573
    %v590 = vrsqrt.pop %v574
    %v591 = vrsqrt.pop %v575
    %v592 = vrsqrt.pop %v576
    %v593 = vrsqrt.pop %v577
    %v594 = vrsqrt.pop %v578
    %v595 = vrsqrt.pop %v579
    %v596 = vrsqrt.pop %v580
    %v597 = vrsqrt.pop %v581
    %v598 = vrsqrt.pop %v582
    %v615 = vrot.slane %v583, 5
    %v616 = vrot.slane %v615, 4
    %v617 = vrot.slane %v584, 5
    %v618 = vrot.slane %v617, 4
    %v619 = vrot.slane %v585, 5
    %v620 = vrot.slane %v619, 4
    %v621 = vrot.slane %v586, 5
    %v622 = vrot.slane %v621, 4
    %v623 = vrot.slane %v587, 5
    %v624 = vrot.slane %v623, 4
    %v625 = vrot.slane %v588, 5
    %v626 = vrot.slane %v625, 4
    %v627 = vrot.slane %v589, 5
    %v628 = vrot.slane %v627, 4
    %v629 = vrot.slane %v590, 5
    %v630 = vrot.slane %v629, 4
    %v631 = vrot.slane %v591, 5
    %v632 = vrot.slane %v631, 4
    %v633 = vrot.slane %v592, 5
    %v634 = vrot.slane %v633, 4
    %v635 = vrot.slane %v593, 5
    %v636 = vrot.slane %v635, 4
    %v637 = vrot.slane %v594, 5
    %v638 = vrot.slane %v637, 4
    %v639 = vrot.slane %v595, 5
    %v640 = vrot.slane %v639, 4
    %v641 = vrot.slane %v596, 5
    %v642 = vrot.slane %v641, 4
    %v643 = vrot.slane %v597, 5
    %v644 = vrot.slane %v643, 4
    %v645 = vrot.slane %v598, 5
    %v646 = vrot.slane %v645, 4
    %v663 = vmul.f32 %v525, %v616
    %v664 = vmul.f32 %v526, %v618
    %v665 = vmul.f32 %v527, %v620
    %v666 = vmul.f32 %v528, %v622
    %v667 = vmul.f32 %v529, %v624
    %v668 = vmul.f32 %v530, %v626
    %v669 = vmul.f32 %v531, %v628
    %v670 = vmul.f32 %v532, %v630
    %v671 = vmul.f32 %v533, %v632
    %v672 = vmul.f32 %v534, %v634
    %v673 = vmul.f32 %v535, %v636
    %v674 = vmul.f32 %v536, %v638
    %v675 = vmul.f32 %v537, %v640
    %v676 = vmul.f32 %v538, %v642
    %v677 = vmul.f32 %v539, %v644
    %v678 = vmul.f32 %v540, %v646
    %v684 = vunpack.c.l.s4 286326784
    %v685 = vunpack.c.0.s8 %v684
    %v686 = vlaneseq
    %v687 = vshrl.u32 %v686, 7
    %v688 = vsub.s32 %v685, %v687
    %v689 = vrot.slane %v287, %v688
    %v691 = vunpack.c.l.s4 858989090
    %v692 = vunpack.c.0.s8 %v691
    %v693 = vlaneseq
    %v694 = vshrl.u32 %v693, 7
    %v695 = vsub.s32 %v692, %v694
    %v696 = vrot.slane %v287, %v695
    %v698 = vunpack.c.l.s4 1431651396
    %v699 = vunpack.c.0.s8 %v698
    %v700 = vlaneseq
    %v701 = vshrl.u32 %v700, 7
    %v702 = vsub.s32 %v699, %v701
    %v703 = vrot.slane %v287, %v702
    %v705 = vunpack.c.l.s4 2004313702
    %v706 = vunpack.c.0.s8 %v705
    %v707 = vlaneseq
    %v708 = vshrl.u32 %v707, 7
    %v709 = vsub.s32 %v706, %v708
    %v710 = vrot.slane %v287, %v709
    %v712 = vunpack.c.l.s4 286326784
    %v713 = vunpack.c.0.s8 %v712
    %v714 = vlaneseq
    %v715 = vshrl.u32 %v714, 7
    %v716 = vsub.s32 %v713, %v715
    %v717 = vrot.slane %v288, %v716
    %v719 = vunpack.c.l.s4 858989090
    %v720 = vunpack.c.0.s8 %v719
    %v721 = vlaneseq
    %v722 = vshrl.u32 %v721, 7
    %v723 = vsub.s32 %v720, %v722
    %v724 = vrot.slane %v288, %v723
    %v726 = vunpack.c.l.s4 1431651396
    %v727 = vunpack.c.0.s8 %v726
    %v728 = vlaneseq
    %v729 = vshrl.u32 %v728, 7
    %v730 = vsub.s32 %v727, %v729
    %v731 = vrot.slane %v288, %v730
    %v733 = vunpack.c.l.s4 2004313702
    %v734 = vunpack.c.0.s8 %v733
    %v735 = vlaneseq
    %v736 = vshrl.u32 %v735, 7
    %v737 = vsub.s32 %v734, %v736
    %v738 = vrot.slane %v288, %v737
    %v740 = vunpack.c.l.s4 286326784
    %v741 = vunpack.c.0.s8 %v740
    %v742 = vlaneseq
    %v743 = vshrl.u32 %v742, 7
    %v744 = vsub.s32 %v741, %v743
    %v745 = vrot.slane %v289, %v744
    %v747 = vunpack.c.l.s4 858989090
    %v748 = vunpack.c.0.s8 %v747
    %v749 = vlaneseq
    %v750 = vshrl.u32 %v749, 7
    %v751 = vsub.s32 %v748, %v750
    %v752 = vrot.slane %v289, %v751
    %v754 = vunpack.c.l.s4 1431651396
    %v755 = vunpack.c.0.s8 %v754
    %v756 = vlaneseq
    %v757 = vshrl.u32 %v756, 7
    %v758 = vsub.s32 %v755, %v757
    %v759 = vrot.slane %v289, %v758
    %v761 = vunpack.c.l.s4 2004313702
    %v762 = vunpack.c.0.s8 %v761
    %v763 = vlaneseq
    %v764 = vshrl.u32 %v763, 7
    %v765 = vsub.s32 %v762, %v764
    %v766 = vrot.slane %v289, %v765
    %v768 = vunpack.c.l.s4 286326784
    %v769 = vunpack.c.0.s8 %v768
    %v770 = vlaneseq
    %v771 = vshrl.u32 %v770, 7
    %v772 = vsub.s32 %v769, %v771
    %v773 = vrot.slane %v290, %v772
    %v775 = vunpack.c.l.s4 858989090
    %v776 = vunpack.c.0.s8 %v775
    %v777 = vlaneseq
    %v778 = vshrl.u32 %v777, 7
    %v779 = vsub.s32 %v776, %v778
    %v780 = vrot.slane %v290, %v779
    %v782 = vunpack.c.l.s4 1431651396
    %v783 = vunpack.c.0.s8 %v782
    %v784 = vlaneseq
    %v785 = vshrl.u32 %v784, 7
    %v786 = vsub.s32 %v783, %v785
    %v787 = vrot.slane %v290, %v786
    %v789 = vunpack.c.l.s4 2004313702
    %v790 = vunpack.c.0.s8 %v789
    %v791 = vlaneseq
    %v792 = vshrl.u32 %v791, 7
    %v793 = vsub.s32 %v790, %v792
    %v794 = vrot.slane %v290, %v793
    %v811 = vmul.f32 %v663, %v689
    %v812 = vmul.f32 %v664, %v696
    %v813 = vmul.f32 %v665, %v703
    %v814 = vmul.f32 %v666, %v710
    %v815 = vmul.f32 %v667, %v717
    %v816 = vmul.f32 %v668, %v724
    %v817 = vmul.f32 %v669, %v731
    %v818 = vmul.f32 %v670, %v738
    %v819 = vmul.f32 %v671, %v745
    %v820 = vmul.f32 %v672, %v752
    %v821 = vmul.f32 %v673, %v759
    %v822 = vmul.f32 %v674, %v766
    %v823 = vmul.f32 %v675, %v773
    %v824 = vmul.f32 %v676, %v780
    %v825 = vmul.f32 %v677, %v787
    %v826 = vmul.f32 %v678, %v794
    %v843 = vrot.slane %v525, 6
    %v844 = vrot.slane %v843, 4
    %v845 = vrot.slane %v526, 6
    %v846 = vrot.slane %v845, 4
    %v847 = vrot.slane %v527, 6
    %v848 = vrot.slane %v847, 4
    %v849 = vrot.slane %v528, 6
    %v850 = vrot.slane %v849, 4
    %v851 = vrot.slane %v529, 6
    %v852 = vrot.slane %v851, 4
    %v853 = vrot.slane %v530, 6
    %v854 = vrot.slane %v853, 4
    %v855 = vrot.slane %v531, 6
    %v856 = vrot.slane %v855, 4
    %v857 = vrot.slane %v532, 6
    %v858 = vrot.slane %v857, 4
    %v859 = vrot.slane %v533, 6
    %v860 = vrot.slane %v859, 4
    %v861 = vrot.slane %v534, 6
    %v862 = vrot.slane %v861, 4
    %v863 = vrot.slane %v535, 6
    %v864 = vrot.slane %v863, 4
    %v865 = vrot.slane %v536, 6
    %v866 = vrot.slane %v865, 4
    %v867 = vrot.slane %v537, 6
    %v868 = vrot.slane %v867, 4
    %v869 = vrot.slane %v538, 6
    %v870 = vrot.slane %v869, 4
    %v871 = vrot.slane %v539, 6
    %v872 = vrot.slane %v871, 4
    %v873 = vrot.slane %v540, 6
    %v874 = vrot.slane %v873, 4
    %v891 = vadd.f32 %v811, %v844
    %v892 = vadd.f32 %v812, %v846
    %v893 = vadd.f32 %v813, %v848
    %v894 = vadd.f32 %v814, %v850
    %v895 = vadd.f32 %v815, %v852
    %v896 = vadd.f32 %v816, %v854
    %v897 = vadd.f32 %v817, %v856
    %v898 = vadd.f32 %v818, %v858
    %v899 = vadd.f32 %v819, %v860
    %v900 = vadd.f32 %v820, %v862
    %v901 = vadd.f32 %v821, %v864
    %v902 = vadd.f32 %v822, %v866
    %v903 = vadd.f32 %v823, %v868
    %v904 = vadd.f32 %v824, %v870
    %v905 = vadd.f32 %v825, %v872
    %v906 = vadd.f32 %v826, %v874
    %v907 = vmax.f32 %v891, 0.0
    %v908 = vmax.f32 %v892, 0.0
    %v909 = vmax.f32 %v893, 0.0
    %v910 = vmax.f32 %v894, 0.0
    %v911 = vmax.f32 %v895, 0.0
    %v912 = vmax.f32 %v896, 0.0
    %v913 = vmax.f32 %v897, 0.0
    %v914 = vmax.f32 %v898, 0.0
    %v915 = vmax.f32 %v899, 0.0
    %v916 = vmax.f32 %v900, 0.0
    %v917 = vmax.f32 %v901, 0.0
    %v918 = vmax.f32 %v902, 0.0
    %v919 = vmax.f32 %v903, 0.0
    %v920 = vmax.f32 %v904, 0.0
    %v921 = vmax.f32 %v905, 0.0
    %v922 = vmax.f32 %v906, 0.0
    %v939 = vlaneseq
    %v940 = vshrl.u32 %v939, 7
    %v941 = vsub.s32 0, %v940
    %v942 = vrot.slane %v907, %v941
    %v943 = vlaneseq
    %v944 = vshrl.u32 %v943, 7
    %v945 = vsub.s32 4, %v944
    %v946 = vrot.slane %v907, %v945
    %v947 = vlaneseq
    %v948 = vshrl.u32 %v947, 7
    %v949 = vsub.s32 0, %v948
    %v950 = vrot.slane %v908, %v949
    %v951 = vlaneseq
    %v952 = vshrl.u32 %v951, 7
    %v953 = vsub.s32 4, %v952
    %v954 = vrot.slane %v908, %v953
    %v955 = vlaneseq
    %v956 = vshrl.u32 %v955, 7
    %v957 = vsub.s32 0, %v956
    %v958 = vrot.slane %v909, %v957
    %v959 = vlaneseq
    %v960 = vshrl.u32 %v959, 7
    %v961 = vsub.s32 4, %v960
    %v962 = vrot.slane %v909, %v961
    %v963 = vlaneseq
    %v964 = vshrl.u32 %v963, 7
    %v965 = vsub.s32 0, %v964
    %v966 = vrot.slane %v910, %v965
    %v967 = vlaneseq
    %v968 = vshrl.u32 %v967, 7
    %v969 = vsub.s32 4, %v968
    %v970 = vrot.slane %v910, %v969
    %v971 = vlaneseq
    %v972 = vshrl.u32 %v971, 7
    %v973 = vsub.s32 0, %v972
    %v974 = vrot.slane %v911, %v973
    %v975 = vlaneseq
    %v976 = vshrl.u32 %v975, 7
    %v977 = vsub.s32 4, %v976
    %v978 = vrot.slane %v911, %v977
    %v979 = vlaneseq
    %v980 = vshrl.u32 %v979, 7
    %v981 = vsub.s32 0, %v980
    %v982 = vrot.slane %v912, %v981
    %v983 = vlaneseq
    %v984 = vshrl.u32 %v983, 7
    %v985 = vsub.s32 4, %v984
    %v986 = vrot.slane %v912, %v985
    %v987 = vlaneseq
    %v988 = vshrl.u32 %v987, 7
    %v989 = vsub.s32 0, %v988
    %v990 = vrot.slane %v913, %v989
    %v991 = vlaneseq
    %v992 = vshrl.u32 %v991, 7
    %v993 = vsub.s32 4, %v992
    %v994 = vrot.slane %v913, %v993
    %v995 = vlaneseq
    %v996 = vshrl.u32 %v995, 7
    %v997 = vsub.s32 0, %v996
    %v998 = vrot.slane %v914, %v997
    %v999 = vlaneseq
    %v1000 = vshrl.u32 %v999, 7
    %v1001 = vsub.s32 4, %v1000
    %v1002 = vrot.slane %v914, %v1001
    %v1003 = vlaneseq
    %v1004 = vshrl.u32 %v1003, 7
    %v1005 = vsub.s32 0, %v1004
    %v1006 = vrot.slane %v915, %v1005
    %v1007 = vlaneseq
    %v1008 = vshrl.u32 %v1007, 7
    %v1009 = vsub.s32 4, %v1008
    %v1010 = vrot.slane %v915, %v1009
    %v1011 = vlaneseq
    %v1012 = vshrl.u32 %v1011, 7
    %v1013 = vsub.s32 0, %v1012
    %v1014 = vrot.slane %v916, %v1013
    %v1015 = vlaneseq
    %v1016 = vshrl.u32 %v1015, 7
    %v1017 = vsub.s32 4, %v1016
    %v1018 = vrot.slane %v916, %v1017
    %v1019 = vlaneseq
    %v1020 = vshrl.u32 %v1019, 7
    %v1021 = vsub.s32 0, %v1020
    %v1022 = vrot.slane %v917, %v1021
    %v1023 = vlaneseq
    %v1024 = vshrl.u32 %v1023, 7
    %v1025 = vsub.s32 4, %v1024
    %v1026 = vrot.slane %v917, %v1025
    %v1027 = vlaneseq
    %v1028 = vshrl.u32 %v1027, 7
    %v1029 = vsub.s32 0, %v1028
    %v1030 = vrot.slane %v918, %v1029
    %v1031 = vlaneseq
    %v1032 = vshrl.u32 %v1031, 7
    %v1033 = vsub.s32 4, %v1032
    %v1034 = vrot.slane %v918, %v1033
    %v1035 = vlaneseq
    %v1036 = vshrl.u32 %v1035, 7
    %v1037 = vsub.s32 0, %v1036
    %v1038 = vrot.slane %v919, %v1037
    %v1039 = vlaneseq
    %v1040 = vshrl.u32 %v1039, 7
    %v1041 = vsub.s32 4, %v1040
    %v1042 = vrot.slane %v919, %v1041
    %v1043 = vlaneseq
    %v1044 = vshrl.u32 %v1043, 7
    %v1045 = vsub.s32 0, %v1044
    %v1046 = vrot.slane %v920, %v1045
    %v1047 = vlaneseq
    %v1048 = vshrl.u32 %v1047, 7
    %v1049 = vsub.s32 4, %v1048
    %v1050 = vrot.slane %v920, %v1049
    %v1051 = vlaneseq
    %v1052 = vshrl.u32 %v1051, 7
    %v1053 = vsub.s32 0, %v1052
    %v1054 = vrot.slane %v921, %v1053
    %v1055 = vlaneseq
    %v1056 = vshrl.u32 %v1055, 7
    %v1057 = vsub.s32 4, %v1056
    %v1058 = vrot.slane %v921, %v1057
    %v1059 = vlaneseq
    %v1060 = vshrl.u32 %v1059, 7
    %v1061 = vsub.s32 0, %v1060
    %v1062 = vrot.slane %v922, %v1061
    %v1063 = vlaneseq
    %v1064 = vshrl.u32 %v1063, 7
    %v1065 = vsub.s32 4, %v1064
    %v1066 = vrot.slane %v922, %v1065
    %v1099 = vpack.c.bf16 %v942, %v942
    %v1100 = vpack.c.bf16 %v946, %v946
    %v1101 = vpack.c.bf16 %v950, %v950
    %v1102 = vpack.c.bf16 %v954, %v954
    %v1103 = vpack.c.bf16 %v958, %v958
    %v1104 = vpack.c.bf16 %v962, %v962
    %v1105 = vpack.c.bf16 %v966, %v966
    %v1106 = vpack.c.bf16 %v970, %v970
    %v1107 = vpack.c.bf16 %v974, %v974
    %v1108 = vpack.c.bf16 %v978, %v978
    %v1109 = vpack.c.bf16 %v982, %v982
    %v1110 = vpack.c.bf16 %v986, %v986
    %v1111 = vpack.c.bf16 %v990, %v990
    %v1112 = vpack.c.bf16 %v994, %v994
    %v1113 = vpack.c.bf16 %v998, %v998
    %v1114 = vpack.c.bf16 %v1002, %v1002
    %v1115 = vpack.c.bf16 %v1006, %v1006
    %v1116 = vpack.c.bf16 %v1010, %v1010
    %v1117 = vpack.c.bf16 %v1014, %v1014
    %v1118 = vpack.c.bf16 %v1018, %v1018
    %v1119 = vpack.c.bf16 %v1022, %v1022
    %v1120 = vpack.c.bf16 %v1026, %v1026
    %v1121 = vpack.c.bf16 %v1030, %v1030
    %v1122 = vpack.c.bf16 %v1034, %v1034
    %v1123 = vpack.c.bf16 %v1038, %v1038
    %v1124 = vpack.c.bf16 %v1042, %v1042
    %v1125 = vpack.c.bf16 %v1046, %v1046
    %v1126 = vpack.c.bf16 %v1050, %v1050
    %v1127 = vpack.c.bf16 %v1054, %v1054
    %v1128 = vpack.c.bf16 %v1058, %v1058
    %v1129 = vpack.c.bf16 %v1062, %v1062
    %v1130 = vpack.c.bf16 %v1066, %v1066
    %v1131 = vld [vmem:[#allocation5] sm:$0xf]
    %v1132 = vld [vmem:[#allocation5 + $0x4] sm:$0xf]
    %v1133 = vld [vmem:[#allocation5 + $0x8] sm:$0xf]
    %v1134 = vld [vmem:[#allocation5 + $0xc] sm:$0xf]
    %v1135 = vld [vmem:[#allocation5 + $0x10] sm:$0xf]
    %v1136 = vld [vmem:[#allocation5 + $0x14] sm:$0xf]
    %v1137 = vld [vmem:[#allocation5 + $0x18] sm:$0xf]
    %v1138 = vld [vmem:[#allocation5 + $0x1c] sm:$0xf]
    %v1139 = vld [vmem:[#allocation5 + $0x20] sm:$0xf]
    %v1140 = vld [vmem:[#allocation5 + $0x24] sm:$0xf]
    %v1141 = vld [vmem:[#allocation5 + $0x28] sm:$0xf]
    %v1142 = vld [vmem:[#allocation5 + $0x2c] sm:$0xf]
    %v1143 = vld [vmem:[#allocation5 + $0x30] sm:$0xf]
    %v1144 = vld [vmem:[#allocation5 + $0x34] sm:$0xf]
    %v1145 = vld [vmem:[#allocation5 + $0x38] sm:$0xf]
    %v1146 = vld [vmem:[#allocation5 + $0x3c] sm:$0xf]
    %v1147 = vld [vmem:[#allocation5 + $0x40] sm:$0xf]
    %v1148 = vld [vmem:[#allocation5 + $0x44] sm:$0xf]
    %v1149 = vld [vmem:[#allocation5 + $0x48] sm:$0xf]
    %v1150 = vld [vmem:[#allocation5 + $0x4c] sm:$0xf]
    %v1151 = vld [vmem:[#allocation5 + $0x50] sm:$0xf]
    %v1152 = vld [vmem:[#allocation5 + $0x54] sm:$0xf]
    %v1153 = vld [vmem:[#allocation5 + $0x58] sm:$0xf]
    %v1154 = vld [vmem:[#allocation5 + $0x5c] sm:$0xf]
    %v1155 = vld [vmem:[#allocation5 + $0x60] sm:$0xf]
    %v1156 = vld [vmem:[#allocation5 + $0x64] sm:$0xf]
    %v1157 = vld [vmem:[#allocation5 + $0x68] sm:$0xf]
    %v1158 = vld [vmem:[#allocation5 + $0x6c] sm:$0xf]
    %v1159 = vld [vmem:[#allocation5 + $0x70] sm:$0xf]
    %v1160 = vld [vmem:[#allocation5 + $0x74] sm:$0xf]
    %v1161 = vld [vmem:[#allocation5 + $0x78] sm:$0xf]
    %v1162 = vld [vmem:[#allocation5 + $0x7c] sm:$0xf]
    %v1163 = vld [vmem:[#allocation5 + $0x80] sm:$0xf]
    %v1164 = vld [vmem:[#allocation5 + $0x84] sm:$0xf]
    %v1165 = vld [vmem:[#allocation5 + $0x88] sm:$0xf]
    %v1166 = vld [vmem:[#allocation5 + $0x8c] sm:$0xf]
    %v1167 = vld [vmem:[#allocation5 + $0x90] sm:$0xf]
    %v1168 = vld [vmem:[#allocation5 + $0x94] sm:$0xf]
    %v1169 = vld [vmem:[#allocation5 + $0x98] sm:$0xf]
    %v1170 = vld [vmem:[#allocation5 + $0x9c] sm:$0xf]
    %v1171 = vld [vmem:[#allocation5 + $0xa0] sm:$0xf]
    %v1172 = vld [vmem:[#allocation5 + $0xa4] sm:$0xf]
    %v1173 = vld [vmem:[#allocation5 + $0xa8] sm:$0xf]
    %v1174 = vld [vmem:[#allocation5 + $0xac] sm:$0xf]
    %v1175 = vld [vmem:[#allocation5 + $0xb0] sm:$0xf]
    %v1176 = vld [vmem:[#allocation5 + $0xb4] sm:$0xf]
    %v1177 = vld [vmem:[#allocation5 + $0xb8] sm:$0xf]
    %v1178 = vld [vmem:[#allocation5 + $0xbc] sm:$0xf]
    %v1179 = vld [vmem:[#allocation5 + $0xc0] sm:$0xf]
    %v1180 = vld [vmem:[#allocation5 + $0xc4] sm:$0xf]
    %v1181 = vld [vmem:[#allocation5 + $0xc8] sm:$0xf]
    %v1182 = vld [vmem:[#allocation5 + $0xcc] sm:$0xf]
    %v1183 = vld [vmem:[#allocation5 + $0xd0] sm:$0xf]
    %v1184 = vld [vmem:[#allocation5 + $0xd4] sm:$0xf]
    %v1185 = vld [vmem:[#allocation5 + $0xd8] sm:$0xf]
    %v1186 = vld [vmem:[#allocation5 + $0xdc] sm:$0xf]
    %v1187 = vld [vmem:[#allocation5 + $0xe0] sm:$0xf]
    %v1188 = vld [vmem:[#allocation5 + $0xe4] sm:$0xf]
    %v1189 = vld [vmem:[#allocation5 + $0xe8] sm:$0xf]
    %v1190 = vld [vmem:[#allocation5 + $0xec] sm:$0xf]
    %v1191 = vld [vmem:[#allocation5 + $0xf0] sm:$0xf]
    %v1192 = vld [vmem:[#allocation5 + $0xf4] sm:$0xf]
    %v1193 = vld [vmem:[#allocation5 + $0xf8] sm:$0xf]
    %v1194 = vld [vmem:[#allocation5 + $0xfc] sm:$0xf]
    %v1195 = vld [vmem:[#allocation5 + $0x100] sm:$0xf]
    %v1196 = vld [vmem:[#allocation5 + $0x104] sm:$0xf]
    %v1197 = vld [vmem:[#allocation5 + $0x108] sm:$0xf]
    %v1198 = vld [vmem:[#allocation5 + $0x10c] sm:$0xf]
    %v1199 = vld [vmem:[#allocation5 + $0x110] sm:$0xf]
    %v1200 = vld [vmem:[#allocation5 + $0x114] sm:$0xf]
    %v1201 = vld [vmem:[#allocation5 + $0x118] sm:$0xf]
    %v1202 = vld [vmem:[#allocation5 + $0x11c] sm:$0xf]
    %v1203 = vld [vmem:[#allocation5 + $0x120] sm:$0xf]
    %v1204 = vld [vmem:[#allocation5 + $0x124] sm:$0xf]
    %v1205 = vld [vmem:[#allocation5 + $0x128] sm:$0xf]
    %v1206 = vld [vmem:[#allocation5 + $0x12c] sm:$0xf]
    %v1207 = vld [vmem:[#allocation5 + $0x130] sm:$0xf]
    %v1208 = vld [vmem:[#allocation5 + $0x134] sm:$0xf]
    %v1209 = vld [vmem:[#allocation5 + $0x138] sm:$0xf]
    %v1210 = vld [vmem:[#allocation5 + $0x13c] sm:$0xf]
    %v1211 = vld [vmem:[#allocation5 + $0x140] sm:$0xf]
    %v1212 = vld [vmem:[#allocation5 + $0x144] sm:$0xf]
    %v1213 = vld [vmem:[#allocation5 + $0x148] sm:$0xf]
    %v1214 = vld [vmem:[#allocation5 + $0x14c] sm:$0xf]
    %v1215 = vld [vmem:[#allocation5 + $0x150] sm:$0xf]
    %v1216 = vld [vmem:[#allocation5 + $0x154] sm:$0xf]
    %v1217 = vld [vmem:[#allocation5 + $0x158] sm:$0xf]
    %v1218 = vld [vmem:[#allocation5 + $0x15c] sm:$0xf]
    %v1219 = vld [vmem:[#allocation5 + $0x160] sm:$0xf]
    %v1220 = vld [vmem:[#allocation5 + $0x164] sm:$0xf]
    %v1221 = vld [vmem:[#allocation5 + $0x168] sm:$0xf]
    %v1222 = vld [vmem:[#allocation5 + $0x16c] sm:$0xf]
    %v1223 = vld [vmem:[#allocation5 + $0x170] sm:$0xf]
    %v1224 = vld [vmem:[#allocation5 + $0x174] sm:$0xf]
    %v1225 = vld [vmem:[#allocation5 + $0x178] sm:$0xf]
    %v1226 = vld [vmem:[#allocation5 + $0x17c] sm:$0xf]
    %v1227 = vld [vmem:[#allocation5 + $0x180] sm:$0xf]
    %v1228 = vld [vmem:[#allocation5 + $0x184] sm:$0xf]
    %v1229 = vld [vmem:[#allocation5 + $0x188] sm:$0xf]
    %v1230 = vld [vmem:[#allocation5 + $0x18c] sm:$0xf]
    %v1231 = vld [vmem:[#allocation5 + $0x190] sm:$0xf]
    %v1232 = vld [vmem:[#allocation5 + $0x194] sm:$0xf]
    %v1233 = vld [vmem:[#allocation5 + $0x198] sm:$0xf]
    %v1234 = vld [vmem:[#allocation5 + $0x19c] sm:$0xf]
    %v1235 = vld [vmem:[#allocation5 + $0x1a0] sm:$0xf]
    %v1236 = vld [vmem:[#allocation5 + $0x1a4] sm:$0xf]
    %v1237 = vld [vmem:[#allocation5 + $0x1a8] sm:$0xf]
    %v1238 = vld [vmem:[#allocation5 + $0x1ac] sm:$0xf]
    %v1239 = vld [vmem:[#allocation5 + $0x1b0] sm:$0xf]
    %v1240 = vld [vmem:[#allocation5 + $0x1b4] sm:$0xf]
    %v1241 = vld [vmem:[#allocation5 + $0x1b8] sm:$0xf]
    %v1242 = vld [vmem:[#allocation5 + $0x1bc] sm:$0xf]
    %v1243 = vld [vmem:[#allocation5 + $0x1c0] sm:$0xf]
    %v1244 = vld [vmem:[#allocation5 + $0x1c4] sm:$0xf]
    %v1245 = vld [vmem:[#allocation5 + $0x1c8] sm:$0xf]
    %v1246 = vld [vmem:[#allocation5 + $0x1cc] sm:$0xf]
    %v1247 = vld [vmem:[#allocation5 + $0x1d0] sm:$0xf]
    %v1248 = vld [vmem:[#allocation5 + $0x1d4] sm:$0xf]
    %v1249 = vld [vmem:[#allocation5 + $0x1d8] sm:$0xf]
    %v1250 = vld [vmem:[#allocation5 + $0x1dc] sm:$0xf]
    %v1251 = vld [vmem:[#allocation5 + $0x1e0] sm:$0xf]
    %v1252 = vld [vmem:[#allocation5 + $0x1e4] sm:$0xf]
    %v1253 = vld [vmem:[#allocation5 + $0x1e8] sm:$0xf]
    %v1254 = vld [vmem:[#allocation5 + $0x1ec] sm:$0xf]
    %v1255 = vld [vmem:[#allocation5 + $0x1f0] sm:$0xf]
    %v1256 = vld [vmem:[#allocation5 + $0x1f4] sm:$0xf]
    %v1257 = vld [vmem:[#allocation5 + $0x1f8] sm:$0xf]
    %v1258 = vld [vmem:[#allocation5 + $0x1fc] sm:$0xf]
    %v1259 = vld [vmem:[#allocation5 + $0x200] sm:$0xf]
    %v1260 = vld [vmem:[#allocation5 + $0x204] sm:$0xf]
    %v1261 = vld [vmem:[#allocation5 + $0x208] sm:$0xf]
    %v1262 = vld [vmem:[#allocation5 + $0x20c] sm:$0xf]
    %v1263 = vld [vmem:[#allocation5 + $0x210] sm:$0xf]
    %v1264 = vld [vmem:[#allocation5 + $0x214] sm:$0xf]
    %v1265 = vld [vmem:[#allocation5 + $0x218] sm:$0xf]
    %v1266 = vld [vmem:[#allocation5 + $0x21c] sm:$0xf]
    %v1267 = vld [vmem:[#allocation5 + $0x220] sm:$0xf]
    %v1268 = vld [vmem:[#allocation5 + $0x224] sm:$0xf]
    %v1269 = vld [vmem:[#allocation5 + $0x228] sm:$0xf]
    %v1270 = vld [vmem:[#allocation5 + $0x22c] sm:$0xf]
    %v1271 = vld [vmem:[#allocation5 + $0x230] sm:$0xf]
    %v1272 = vld [vmem:[#allocation5 + $0x234] sm:$0xf]
    %v1273 = vld [vmem:[#allocation5 + $0x238] sm:$0xf]
    %v1274 = vld [vmem:[#allocation5 + $0x23c] sm:$0xf]
    %v1275 = vld [vmem:[#allocation5 + $0x240] sm:$0xf]
    %v1276 = vld [vmem:[#allocation5 + $0x244] sm:$0xf]
    %v1277 = vld [vmem:[#allocation5 + $0x248] sm:$0xf]
    %v1278 = vld [vmem:[#allocation5 + $0x24c] sm:$0xf]
    %v1279 = vld [vmem:[#allocation5 + $0x250] sm:$0xf]
    %v1280 = vld [vmem:[#allocation5 + $0x254] sm:$0xf]
    %v1281 = vld [vmem:[#allocation5 + $0x258] sm:$0xf]
    %v1282 = vld [vmem:[#allocation5 + $0x25c] sm:$0xf]
    %v1283 = vld [vmem:[#allocation5 + $0x260] sm:$0xf]
    %v1284 = vld [vmem:[#allocation5 + $0x264] sm:$0xf]
    %v1285 = vld [vmem:[#allocation5 + $0x268] sm:$0xf]
    %v1286 = vld [vmem:[#allocation5 + $0x26c] sm:$0xf]
    %v1287 = vld [vmem:[#allocation5 + $0x270] sm:$0xf]
    %v1288 = vld [vmem:[#allocation5 + $0x274] sm:$0xf]
    %v1289 = vld [vmem:[#allocation5 + $0x278] sm:$0xf]
    %v1290 = vld [vmem:[#allocation5 + $0x27c] sm:$0xf]
    %v1291 = vld [vmem:[#allocation5 + $0x280] sm:$0xf]
    %v1292 = vld [vmem:[#allocation5 + $0x284] sm:$0xf]
    %v1293 = vld [vmem:[#allocation5 + $0x288] sm:$0xf]
    %v1294 = vld [vmem:[#allocation5 + $0x28c] sm:$0xf]
    %v1295 = vld [vmem:[#allocation5 + $0x290] sm:$0xf]
    %v1296 = vld [vmem:[#allocation5 + $0x294] sm:$0xf]
    %v1297 = vld [vmem:[#allocation5 + $0x298] sm:$0xf]
    %v1298 = vld [vmem:[#allocation5 + $0x29c] sm:$0xf]
    %v1299 = vld [vmem:[#allocation5 + $0x2a0] sm:$0xf]
    %v1300 = vld [vmem:[#allocation5 + $0x2a4] sm:$0xf]
    %v1301 = vld [vmem:[#allocation5 + $0x2a8] sm:$0xf]
    %v1302 = vld [vmem:[#allocation5 + $0x2ac] sm:$0xf]
    %v1303 = vld [vmem:[#allocation5 + $0x2b0] sm:$0xf]
    %v1304 = vld [vmem:[#allocation5 + $0x2b4] sm:$0xf]
    %v1305 = vld [vmem:[#allocation5 + $0x2b8] sm:$0xf]
    %v1306 = vld [vmem:[#allocation5 + $0x2bc] sm:$0xf]
    %v1307 = vld [vmem:[#allocation5 + $0x2c0] sm:$0xf]
    %v1308 = vld [vmem:[#allocation5 + $0x2c4] sm:$0xf]
    %v1309 = vld [vmem:[#allocation5 + $0x2c8] sm:$0xf]
    %v1310 = vld [vmem:[#allocation5 + $0x2cc] sm:$0xf]
    %v1311 = vld [vmem:[#allocation5 + $0x2d0] sm:$0xf]
    %v1312 = vld [vmem:[#allocation5 + $0x2d4] sm:$0xf]
    %v1313 = vld [vmem:[#allocation5 + $0x2d8] sm:$0xf]
    %v1314 = vld [vmem:[#allocation5 + $0x2dc] sm:$0xf]
    %v1315 = vld [vmem:[#allocation5 + $0x2e0] sm:$0xf]
    %v1316 = vld [vmem:[#allocation5 + $0x2e4] sm:$0xf]
    %v1317 = vld [vmem:[#allocation5 + $0x2e8] sm:$0xf]
    %v1318 = vld [vmem:[#allocation5 + $0x2ec] sm:$0xf]
    %v1319 = vld [vmem:[#allocation5 + $0x2f0] sm:$0xf]
    %v1320 = vld [vmem:[#allocation5 + $0x2f4] sm:$0xf]
    %v1321 = vld [vmem:[#allocation5 + $0x2f8] sm:$0xf]
    %v1322 = vld [vmem:[#allocation5 + $0x2fc] sm:$0xf]
    %v1323 = vld [vmem:[#allocation5 + $0x300] sm:$0xf]
    %v1324 = vld [vmem:[#allocation5 + $0x304] sm:$0xf]
    %v1325 = vld [vmem:[#allocation5 + $0x308] sm:$0xf]
    %v1326 = vld [vmem:[#allocation5 + $0x30c] sm:$0xf]
    %v1327 = vld [vmem:[#allocation5 + $0x310] sm:$0xf]
    %v1328 = vld [vmem:[#allocation5 + $0x314] sm:$0xf]
    %v1329 = vld [vmem:[#allocation5 + $0x318] sm:$0xf]
    %v1330 = vld [vmem:[#allocation5 + $0x31c] sm:$0xf]
    %v1331 = vld [vmem:[#allocation5 + $0x320] sm:$0xf]
    %v1332 = vld [vmem:[#allocation5 + $0x324] sm:$0xf]
    %v1333 = vld [vmem:[#allocation5 + $0x328] sm:$0xf]
    %v1334 = vld [vmem:[#allocation5 + $0x32c] sm:$0xf]
    %v1335 = vld [vmem:[#allocation5 + $0x330] sm:$0xf]
    %v1336 = vld [vmem:[#allocation5 + $0x334] sm:$0xf]
    %v1337 = vld [vmem:[#allocation5 + $0x338] sm:$0xf]
    %v1338 = vld [vmem:[#allocation5 + $0x33c] sm:$0xf]
    %v1339 = vld [vmem:[#allocation5 + $0x340] sm:$0xf]
    %v1340 = vld [vmem:[#allocation5 + $0x344] sm:$0xf]
    %v1341 = vld [vmem:[#allocation5 + $0x348] sm:$0xf]
    %v1342 = vld [vmem:[#allocation5 + $0x34c] sm:$0xf]
    %v1343 = vld [vmem:[#allocation5 + $0x350] sm:$0xf]
    %v1344 = vld [vmem:[#allocation5 + $0x354] sm:$0xf]
    %v1345 = vld [vmem:[#allocation5 + $0x358] sm:$0xf]
    %v1346 = vld [vmem:[#allocation5 + $0x35c] sm:$0xf]
    %v1347 = vld [vmem:[#allocation5 + $0x360] sm:$0xf]
    %v1348 = vld [vmem:[#allocation5 + $0x364] sm:$0xf]
    %v1349 = vld [vmem:[#allocation5 + $0x368] sm:$0xf]
    %v1350 = vld [vmem:[#allocation5 + $0x36c] sm:$0xf]
    %v1351 = vld [vmem:[#allocation5 + $0x370] sm:$0xf]
    %v1352 = vld [vmem:[#allocation5 + $0x374] sm:$0xf]
    %v1353 = vld [vmem:[#allocation5 + $0x378] sm:$0xf]
    %v1354 = vld [vmem:[#allocation5 + $0x37c] sm:$0xf]
    %v1355 = vld [vmem:[#allocation5 + $0x380] sm:$0xf]
    %v1356 = vld [vmem:[#allocation5 + $0x384] sm:$0xf]
    %v1357 = vld [vmem:[#allocation5 + $0x388] sm:$0xf]
    %v1358 = vld [vmem:[#allocation5 + $0x38c] sm:$0xf]
    %v1359 = vld [vmem:[#allocation5 + $0x390] sm:$0xf]
    %v1360 = vld [vmem:[#allocation5 + $0x394] sm:$0xf]
    %v1361 = vld [vmem:[#allocation5 + $0x398] sm:$0xf]
    %v1362 = vld [vmem:[#allocation5 + $0x39c] sm:$0xf]
    %v1363 = vld [vmem:[#allocation5 + $0x3a0] sm:$0xf]
    %v1364 = vld [vmem:[#allocation5 + $0x3a4] sm:$0xf]
    %v1365 = vld [vmem:[#allocation5 + $0x3a8] sm:$0xf]
    %v1366 = vld [vmem:[#allocation5 + $0x3ac] sm:$0xf]
    %v1367 = vld [vmem:[#allocation5 + $0x3b0] sm:$0xf]
    %v1368 = vld [vmem:[#allocation5 + $0x3b4] sm:$0xf]
    %v1369 = vld [vmem:[#allocation5 + $0x3b8] sm:$0xf]
    %v1370 = vld [vmem:[#allocation5 + $0x3bc] sm:$0xf]
    %v1371 = vld [vmem:[#allocation5 + $0x3c0] sm:$0xf]
    %v1372 = vld [vmem:[#allocation5 + $0x3c4] sm:$0xf]
    %v1373 = vld [vmem:[#allocation5 + $0x3c8] sm:$0xf]
    %v1374 = vld [vmem:[#allocation5 + $0x3cc] sm:$0xf]
    %v1375 = vld [vmem:[#allocation5 + $0x3d0] sm:$0xf]
    %v1376 = vld [vmem:[#allocation5 + $0x3d4] sm:$0xf]
    %v1377 = vld [vmem:[#allocation5 + $0x3d8] sm:$0xf]
    %v1378 = vld [vmem:[#allocation5 + $0x3dc] sm:$0xf]
    %v1379 = vld [vmem:[#allocation5 + $0x3e0] sm:$0xf]
    %v1380 = vld [vmem:[#allocation5 + $0x3e4] sm:$0xf]
    %v1381 = vld [vmem:[#allocation5 + $0x3e8] sm:$0xf]
    %v1382 = vld [vmem:[#allocation5 + $0x3ec] sm:$0xf]
    %v1383 = vld [vmem:[#allocation5 + $0x3f0] sm:$0xf]
    %v1384 = vld [vmem:[#allocation5 + $0x3f4] sm:$0xf]
    %v1385 = vld [vmem:[#allocation5 + $0x3f8] sm:$0xf]
    %v1386 = vld [vmem:[#allocation5 + $0x3fc] sm:$0xf]
    %v1387 = vld [vmem:[#allocation5 + $0x400] sm:$0xf]
    %v1388 = vld [vmem:[#allocation5 + $0x404] sm:$0xf]
    %v1389 = vld [vmem:[#allocation5 + $0x408] sm:$0xf]
    %v1390 = vld [vmem:[#allocation5 + $0x40c] sm:$0xf]
    %v1391 = vld [vmem:[#allocation5 + $0x410] sm:$0xf]
    %v1392 = vld [vmem:[#allocation5 + $0x414] sm:$0xf]
    %v1393 = vld [vmem:[#allocation5 + $0x418] sm:$0xf]
    %v1394 = vld [vmem:[#allocation5 + $0x41c] sm:$0xf]
    %v1395 = vld [vmem:[#allocation5 + $0x420] sm:$0xf]
    %v1396 = vld [vmem:[#allocation5 + $0x424] sm:$0xf]
    %v1397 = vld [vmem:[#allocation5 + $0x428] sm:$0xf]
    %v1398 = vld [vmem:[#allocation5 + $0x42c] sm:$0xf]
    %v1399 = vld [vmem:[#allocation5 + $0x430] sm:$0xf]
    %v1400 = vld [vmem:[#allocation5 + $0x434] sm:$0xf]
    %v1401 = vld [vmem:[#allocation5 + $0x438] sm:$0xf]
    %v1402 = vld [vmem:[#allocation5 + $0x43c] sm:$0xf]
    %v1403 = vld [vmem:[#allocation5 + $0x440] sm:$0xf]
    %v1404 = vld [vmem:[#allocation5 + $0x444] sm:$0xf]
    %v1405 = vld [vmem:[#allocation5 + $0x448] sm:$0xf]
    %v1406 = vld [vmem:[#allocation5 + $0x44c] sm:$0xf]
    %v1407 = vld [vmem:[#allocation5 + $0x450] sm:$0xf]
    %v1408 = vld [vmem:[#allocation5 + $0x454] sm:$0xf]
    %v1409 = vld [vmem:[#allocation5 + $0x458] sm:$0xf]
    %v1410 = vld [vmem:[#allocation5 + $0x45c] sm:$0xf]
    %v1411 = vld [vmem:[#allocation5 + $0x460] sm:$0xf]
    %v1412 = vld [vmem:[#allocation5 + $0x464] sm:$0xf]
    %v1413 = vld [vmem:[#allocation5 + $0x468] sm:$0xf]
    %v1414 = vld [vmem:[#allocation5 + $0x46c] sm:$0xf]
    %v1415 = vld [vmem:[#allocation5 + $0x470] sm:$0xf]
    %v1416 = vld [vmem:[#allocation5 + $0x474] sm:$0xf]
    %v1417 = vld [vmem:[#allocation5 + $0x478] sm:$0xf]
    %v1418 = vld [vmem:[#allocation5 + $0x47c] sm:$0xf]
    %v1419 = vld [vmem:[#allocation5 + $0x480] sm:$0xf]
    %v1420 = vld [vmem:[#allocation5 + $0x484] sm:$0xf]
    %v1421 = vld [vmem:[#allocation5 + $0x488] sm:$0xf]
    %v1422 = vld [vmem:[#allocation5 + $0x48c] sm:$0xf]
    %v1423 = vld [vmem:[#allocation5 + $0x490] sm:$0xf]
    %v1424 = vld [vmem:[#allocation5 + $0x494] sm:$0xf]
    %v1425 = vld [vmem:[#allocation5 + $0x498] sm:$0xf]
    %v1426 = vld [vmem:[#allocation5 + $0x49c] sm:$0xf]
    %v1427 = vld [vmem:[#allocation5 + $0x4a0] sm:$0xf]
    %v1428 = vld [vmem:[#allocation5 + $0x4a4] sm:$0xf]
    %v1429 = vld [vmem:[#allocation5 + $0x4a8] sm:$0xf]
    %v1430 = vld [vmem:[#allocation5 + $0x4ac] sm:$0xf]
    %v1431 = vld [vmem:[#allocation5 + $0x4b0] sm:$0xf]
    %v1432 = vld [vmem:[#allocation5 + $0x4b4] sm:$0xf]
    %v1433 = vld [vmem:[#allocation5 + $0x4b8] sm:$0xf]
    %v1434 = vld [vmem:[#allocation5 + $0x4bc] sm:$0xf]
    %v1435 = vld [vmem:[#allocation5 + $0x4c0] sm:$0xf]
    %v1436 = vld [vmem:[#allocation5 + $0x4c4] sm:$0xf]
    %v1437 = vld [vmem:[#allocation5 + $0x4c8] sm:$0xf]
    %v1438 = vld [vmem:[#allocation5 + $0x4cc] sm:$0xf]
    %v1439 = vld [vmem:[#allocation5 + $0x4d0] sm:$0xf]
    %v1440 = vld [vmem:[#allocation5 + $0x4d4] sm:$0xf]
    %v1441 = vld [vmem:[#allocation5 + $0x4d8] sm:$0xf]
    %v1442 = vld [vmem:[#allocation5 + $0x4dc] sm:$0xf]
    %v1443 = vld [vmem:[#allocation5 + $0x4e0] sm:$0xf]
    %v1444 = vld [vmem:[#allocation5 + $0x4e4] sm:$0xf]
    %v1445 = vld [vmem:[#allocation5 + $0x4e8] sm:$0xf]
    %v1446 = vld [vmem:[#allocation5 + $0x4ec] sm:$0xf]
    %v1447 = vld [vmem:[#allocation5 + $0x4f0] sm:$0xf]
    %v1448 = vld [vmem:[#allocation5 + $0x4f4] sm:$0xf]
    %v1449 = vld [vmem:[#allocation5 + $0x4f8] sm:$0xf]
    %v1450 = vld [vmem:[#allocation5 + $0x4fc] sm:$0xf]
    %v1451 = vld [vmem:[#allocation5 + $0x500] sm:$0xf]
    %v1452 = vld [vmem:[#allocation5 + $0x504] sm:$0xf]
    %v1453 = vld [vmem:[#allocation5 + $0x508] sm:$0xf]
    %v1454 = vld [vmem:[#allocation5 + $0x50c] sm:$0xf]
    %v1455 = vld [vmem:[#allocation5 + $0x510] sm:$0xf]
    %v1456 = vld [vmem:[#allocation5 + $0x514] sm:$0xf]
    %v1457 = vld [vmem:[#allocation5 + $0x518] sm:$0xf]
    %v1458 = vld [vmem:[#allocation5 + $0x51c] sm:$0xf]
    %v1459 = vld [vmem:[#allocation5 + $0x520] sm:$0xf]
    %v1460 = vld [vmem:[#allocation5 + $0x524] sm:$0xf]
    %v1461 = vld [vmem:[#allocation5 + $0x528] sm:$0xf]
    %v1462 = vld [vmem:[#allocation5 + $0x52c] sm:$0xf]
    %v1463 = vld [vmem:[#allocation5 + $0x530] sm:$0xf]
    %v1464 = vld [vmem:[#allocation5 + $0x534] sm:$0xf]
    %v1465 = vld [vmem:[#allocation5 + $0x538] sm:$0xf]
    %v1466 = vld [vmem:[#allocation5 + $0x53c] sm:$0xf]
    %v1467 = vld [vmem:[#allocation5 + $0x540] sm:$0xf]
    %v1468 = vld [vmem:[#allocation5 + $0x544] sm:$0xf]
    %v1469 = vld [vmem:[#allocation5 + $0x548] sm:$0xf]
    %v1470 = vld [vmem:[#allocation5 + $0x54c] sm:$0xf]
    %v1471 = vld [vmem:[#allocation5 + $0x550] sm:$0xf]
    %v1472 = vld [vmem:[#allocation5 + $0x554] sm:$0xf]
    %v1473 = vld [vmem:[#allocation5 + $0x558] sm:$0xf]
    %v1474 = vld [vmem:[#allocation5 + $0x55c] sm:$0xf]
    %v1475 = vld [vmem:[#allocation5 + $0x560] sm:$0xf]
    %v1476 = vld [vmem:[#allocation5 + $0x564] sm:$0xf]
    %v1477 = vld [vmem:[#allocation5 + $0x568] sm:$0xf]
    %v1478 = vld [vmem:[#allocation5 + $0x56c] sm:$0xf]
    %v1479 = vld [vmem:[#allocation5 + $0x570] sm:$0xf]
    %v1480 = vld [vmem:[#allocation5 + $0x574] sm:$0xf]
    %v1481 = vld [vmem:[#allocation5 + $0x578] sm:$0xf]
    %v1482 = vld [vmem:[#allocation5 + $0x57c] sm:$0xf]
    %v1483 = vld [vmem:[#allocation5 + $0x580] sm:$0xf]
    %v1484 = vld [vmem:[#allocation5 + $0x584] sm:$0xf]
    %v1485 = vld [vmem:[#allocation5 + $0x588] sm:$0xf]
    %v1486 = vld [vmem:[#allocation5 + $0x58c] sm:$0xf]
    %v1487 = vld [vmem:[#allocation5 + $0x590] sm:$0xf]
    %v1488 = vld [vmem:[#allocation5 + $0x594] sm:$0xf]
    %v1489 = vld [vmem:[#allocation5 + $0x598] sm:$0xf]
    %v1490 = vld [vmem:[#allocation5 + $0x59c] sm:$0xf]
    %v1491 = vld [vmem:[#allocation5 + $0x5a0] sm:$0xf]
    %v1492 = vld [vmem:[#allocation5 + $0x5a4] sm:$0xf]
    %v1493 = vld [vmem:[#allocation5 + $0x5a8] sm:$0xf]
    %v1494 = vld [vmem:[#allocation5 + $0x5ac] sm:$0xf]
    %v1495 = vld [vmem:[#allocation5 + $0x5b0] sm:$0xf]
    %v1496 = vld [vmem:[#allocation5 + $0x5b4] sm:$0xf]
    %v1497 = vld [vmem:[#allocation5 + $0x5b8] sm:$0xf]
    %v1498 = vld [vmem:[#allocation5 + $0x5bc] sm:$0xf]
    %v1499 = vld [vmem:[#allocation5 + $0x5c0] sm:$0xf]
    %v1500 = vld [vmem:[#allocation5 + $0x5c4] sm:$0xf]
    %v1501 = vld [vmem:[#allocation5 + $0x5c8] sm:$0xf]
    %v1502 = vld [vmem:[#allocation5 + $0x5cc] sm:$0xf]
    %v1503 = vld [vmem:[#allocation5 + $0x5d0] sm:$0xf]
    %v1504 = vld [vmem:[#allocation5 + $0x5d4] sm:$0xf]
    %v1505 = vld [vmem:[#allocation5 + $0x5d8] sm:$0xf]
    %v1506 = vld [vmem:[#allocation5 + $0x5dc] sm:$0xf]
    %v1507 = vld [vmem:[#allocation5 + $0x5e0] sm:$0xf]
    %v1508 = vld [vmem:[#allocation5 + $0x5e4] sm:$0xf]
    %v1509 = vld [vmem:[#allocation5 + $0x5e8] sm:$0xf]
    %v1510 = vld [vmem:[#allocation5 + $0x5ec] sm:$0xf]
    %v1511 = vld [vmem:[#allocation5 + $0x5f0] sm:$0xf]
    %v1512 = vld [vmem:[#allocation5 + $0x5f4] sm:$0xf]
    %v1513 = vld [vmem:[#allocation5 + $0x5f8] sm:$0xf]
    %v1514 = vld [vmem:[#allocation5 + $0x5fc] sm:$0xf]
    %v1515 = vld [vmem:[#allocation5 + $0x600] sm:$0xf]
    %v1516 = vld [vmem:[#allocation5 + $0x604] sm:$0xf]
    %v1517 = vld [vmem:[#allocation5 + $0x608] sm:$0xf]
    %v1518 = vld [vmem:[#allocation5 + $0x60c] sm:$0xf]
    %v1519 = vld [vmem:[#allocation5 + $0x610] sm:$0xf]
    %v1520 = vld [vmem:[#allocation5 + $0x614] sm:$0xf]
    %v1521 = vld [vmem:[#allocation5 + $0x618] sm:$0xf]
    %v1522 = vld [vmem:[#allocation5 + $0x61c] sm:$0xf]
    %v1523 = vld [vmem:[#allocation5 + $0x620] sm:$0xf]
    %v1524 = vld [vmem:[#allocation5 + $0x624] sm:$0xf]
    %v1525 = vld [vmem:[#allocation5 + $0x628] sm:$0xf]
    %v1526 = vld [vmem:[#allocation5 + $0x62c] sm:$0xf]
    %v1527 = vld [vmem:[#allocation5 + $0x630] sm:$0xf]
    %v1528 = vld [vmem:[#allocation5 + $0x634] sm:$0xf]
    %v1529 = vld [vmem:[#allocation5 + $0x638] sm:$0xf]
    %v1530 = vld [vmem:[#allocation5 + $0x63c] sm:$0xf]
    %v1531 = vld [vmem:[#allocation5 + $0x640] sm:$0xf]
    %v1532 = vld [vmem:[#allocation5 + $0x644] sm:$0xf]
    %v1533 = vld [vmem:[#allocation5 + $0x648] sm:$0xf]
    %v1534 = vld [vmem:[#allocation5 + $0x64c] sm:$0xf]
    %v1535 = vld [vmem:[#allocation5 + $0x650] sm:$0xf]
    %v1536 = vld [vmem:[#allocation5 + $0x654] sm:$0xf]
    %v1537 = vld [vmem:[#allocation5 + $0x658] sm:$0xf]
    %v1538 = vld [vmem:[#allocation5 + $0x65c] sm:$0xf]
    %v1539 = vld [vmem:[#allocation5 + $0x660] sm:$0xf]
    %v1540 = vld [vmem:[#allocation5 + $0x664] sm:$0xf]
    %v1541 = vld [vmem:[#allocation5 + $0x668] sm:$0xf]
    %v1542 = vld [vmem:[#allocation5 + $0x66c] sm:$0xf]
    %v1543 = vld [vmem:[#allocation5 + $0x670] sm:$0xf]
    %v1544 = vld [vmem:[#allocation5 + $0x674] sm:$0xf]
    %v1545 = vld [vmem:[#allocation5 + $0x678] sm:$0xf]
    %v1546 = vld [vmem:[#allocation5 + $0x67c] sm:$0xf]
    %v1547 = vld [vmem:[#allocation5 + $0x680] sm:$0xf]
    %v1548 = vld [vmem:[#allocation5 + $0x684] sm:$0xf]
    %v1549 = vld [vmem:[#allocation5 + $0x688] sm:$0xf]
    %v1550 = vld [vmem:[#allocation5 + $0x68c] sm:$0xf]
    %v1551 = vld [vmem:[#allocation5 + $0x690] sm:$0xf]
    %v1552 = vld [vmem:[#allocation5 + $0x694] sm:$0xf]
    %v1553 = vld [vmem:[#allocation5 + $0x698] sm:$0xf]
    %v1554 = vld [vmem:[#allocation5 + $0x69c] sm:$0xf]
    %v1555 = vld [vmem:[#allocation5 + $0x6a0] sm:$0xf]
    %v1556 = vld [vmem:[#allocation5 + $0x6a4] sm:$0xf]
    %v1557 = vld [vmem:[#allocation5 + $0x6a8] sm:$0xf]
    %v1558 = vld [vmem:[#allocation5 + $0x6ac] sm:$0xf]
    %v1559 = vld [vmem:[#allocation5 + $0x6b0] sm:$0xf]
    %v1560 = vld [vmem:[#allocation5 + $0x6b4] sm:$0xf]
    %v1561 = vld [vmem:[#allocation5 + $0x6b8] sm:$0xf]
    %v1562 = vld [vmem:[#allocation5 + $0x6bc] sm:$0xf]
    %v1563 = vld [vmem:[#allocation5 + $0x6c0] sm:$0xf]
    %v1564 = vld [vmem:[#allocation5 + $0x6c4] sm:$0xf]
    %v1565 = vld [vmem:[#allocation5 + $0x6c8] sm:$0xf]
    %v1566 = vld [vmem:[#allocation5 + $0x6cc] sm:$0xf]
    %v1567 = vld [vmem:[#allocation5 + $0x6d0] sm:$0xf]
    %v1568 = vld [vmem:[#allocation5 + $0x6d4] sm:$0xf]
    %v1569 = vld [vmem:[#allocation5 + $0x6d8] sm:$0xf]
    %v1570 = vld [vmem:[#allocation5 + $0x6dc] sm:$0xf]
    %v1571 = vld [vmem:[#allocation5 + $0x6e0] sm:$0xf]
    %v1572 = vld [vmem:[#allocation5 + $0x6e4] sm:$0xf]
    %v1573 = vld [vmem:[#allocation5 + $0x6e8] sm:$0xf]
    %v1574 = vld [vmem:[#allocation5 + $0x6ec] sm:$0xf]
    %v1575 = vld [vmem:[#allocation5 + $0x6f0] sm:$0xf]
    %v1576 = vld [vmem:[#allocation5 + $0x6f4] sm:$0xf]
    %v1577 = vld [vmem:[#allocation5 + $0x6f8] sm:$0xf]
    %v1578 = vld [vmem:[#allocation5 + $0x6fc] sm:$0xf]
    %v1579 = vld [vmem:[#allocation5 + $0x700] sm:$0xf]
    %v1580 = vld [vmem:[#allocation5 + $0x704] sm:$0xf]
    %v1581 = vld [vmem:[#allocation5 + $0x708] sm:$0xf]
    %v1582 = vld [vmem:[#allocation5 + $0x70c] sm:$0xf]
    %v1583 = vld [vmem:[#allocation5 + $0x710] sm:$0xf]
    %v1584 = vld [vmem:[#allocation5 + $0x714] sm:$0xf]
    %v1585 = vld [vmem:[#allocation5 + $0x718] sm:$0xf]
    %v1586 = vld [vmem:[#allocation5 + $0x71c] sm:$0xf]
    %v1587 = vld [vmem:[#allocation5 + $0x720] sm:$0xf]
    %v1588 = vld [vmem:[#allocation5 + $0x724] sm:$0xf]
    %v1589 = vld [vmem:[#allocation5 + $0x728] sm:$0xf]
    %v1590 = vld [vmem:[#allocation5 + $0x72c] sm:$0xf]
    %v1591 = vld [vmem:[#allocation5 + $0x730] sm:$0xf]
    %v1592 = vld [vmem:[#allocation5 + $0x734] sm:$0xf]
    %v1593 = vld [vmem:[#allocation5 + $0x738] sm:$0xf]
    %v1594 = vld [vmem:[#allocation5 + $0x73c] sm:$0xf]
    %v1595 = vld [vmem:[#allocation5 + $0x740] sm:$0xf]
    %v1596 = vld [vmem:[#allocation5 + $0x744] sm:$0xf]
    %v1597 = vld [vmem:[#allocation5 + $0x748] sm:$0xf]
    %v1598 = vld [vmem:[#allocation5 + $0x74c] sm:$0xf]
    %v1599 = vld [vmem:[#allocation5 + $0x750] sm:$0xf]
    %v1600 = vld [vmem:[#allocation5 + $0x754] sm:$0xf]
    %v1601 = vld [vmem:[#allocation5 + $0x758] sm:$0xf]
    %v1602 = vld [vmem:[#allocation5 + $0x75c] sm:$0xf]
    %v1603 = vld [vmem:[#allocation5 + $0x760] sm:$0xf]
    %v1604 = vld [vmem:[#allocation5 + $0x764] sm:$0xf]
    %v1605 = vld [vmem:[#allocation5 + $0x768] sm:$0xf]
    %v1606 = vld [vmem:[#allocation5 + $0x76c] sm:$0xf]
    %v1607 = vld [vmem:[#allocation5 + $0x770] sm:$0xf]
    %v1608 = vld [vmem:[#allocation5 + $0x774] sm:$0xf]
    %v1609 = vld [vmem:[#allocation5 + $0x778] sm:$0xf]
    %v1610 = vld [vmem:[#allocation5 + $0x77c] sm:$0xf]
    %v1611 = vld [vmem:[#allocation5 + $0x780] sm:$0xf]
    %v1612 = vld [vmem:[#allocation5 + $0x784] sm:$0xf]
    %v1613 = vld [vmem:[#allocation5 + $0x788] sm:$0xf]
    %v1614 = vld [vmem:[#allocation5 + $0x78c] sm:$0xf]
    %v1615 = vld [vmem:[#allocation5 + $0x790] sm:$0xf]
    %v1616 = vld [vmem:[#allocation5 + $0x794] sm:$0xf]
    %v1617 = vld [vmem:[#allocation5 + $0x798] sm:$0xf]
    %v1618 = vld [vmem:[#allocation5 + $0x79c] sm:$0xf]
    %v1619 = vld [vmem:[#allocation5 + $0x7a0] sm:$0xf]
    %v1620 = vld [vmem:[#allocation5 + $0x7a4] sm:$0xf]
    %v1621 = vld [vmem:[#allocation5 + $0x7a8] sm:$0xf]
    %v1622 = vld [vmem:[#allocation5 + $0x7ac] sm:$0xf]
    %v1623 = vld [vmem:[#allocation5 + $0x7b0] sm:$0xf]
    %v1624 = vld [vmem:[#allocation5 + $0x7b4] sm:$0xf]
    %v1625 = vld [vmem:[#allocation5 + $0x7b8] sm:$0xf]
    %v1626 = vld [vmem:[#allocation5 + $0x7bc] sm:$0xf]
    %v1627 = vld [vmem:[#allocation5 + $0x7c0] sm:$0xf]
    %v1628 = vld [vmem:[#allocation5 + $0x7c4] sm:$0xf]
    %v1629 = vld [vmem:[#allocation5 + $0x7c8] sm:$0xf]
    %v1630 = vld [vmem:[#allocation5 + $0x7cc] sm:$0xf]
    %v1631 = vld [vmem:[#allocation5 + $0x7d0] sm:$0xf]
    %v1632 = vld [vmem:[#allocation5 + $0x7d4] sm:$0xf]
    %v1633 = vld [vmem:[#allocation5 + $0x7d8] sm:$0xf]
    %v1634 = vld [vmem:[#allocation5 + $0x7dc] sm:$0xf]
    %v1635 = vld [vmem:[#allocation5 + $0x7e0] sm:$0xf]
    %v1636 = vld [vmem:[#allocation5 + $0x7e4] sm:$0xf]
    %v1637 = vld [vmem:[#allocation5 + $0x7e8] sm:$0xf]
    %v1638 = vld [vmem:[#allocation5 + $0x7ec] sm:$0xf]
    %v1639 = vld [vmem:[#allocation5 + $0x7f0] sm:$0xf]
    %v1640 = vld [vmem:[#allocation5 + $0x7f4] sm:$0xf]
    %v1641 = vld [vmem:[#allocation5 + $0x7f8] sm:$0xf]
    %v1642 = vld [vmem:[#allocation5 + $0x7fc] sm:$0xf]
    %v1643 = vld [vmem:[%s3] sm:$0x1]
    %v2156 = vunpack.c.l.b16 %v1131
    %v2157 = vunpack.c.l.b16 %v1132
    %v2158 = vunpack.c.l.b16 %v1133
    %v2159 = vunpack.c.l.b16 %v1134
    %v2160 = vunpack.c.l.b16 %v1135
    %v2161 = vunpack.c.l.b16 %v1136
    %v2162 = vunpack.c.l.b16 %v1137
    %v2163 = vunpack.c.l.b16 %v1138
    %v2164 = vunpack.c.l.b16 %v1139
    %v2165 = vunpack.c.l.b16 %v1140
    %v2166 = vunpack.c.l.b16 %v1141
    %v2167 = vunpack.c.l.b16 %v1142
    %v2168 = vunpack.c.l.b16 %v1143
    %v2169 = vunpack.c.l.b16 %v1144
    %v2170 = vunpack.c.l.b16 %v1145
    %v2171 = vunpack.c.l.b16 %v1146
    %v2172 = vunpack.c.l.b16 %v1147
    %v2173 = vunpack.c.l.b16 %v1148
    %v2174 = vunpack.c.l.b16 %v1149
    %v2175 = vunpack.c.l.b16 %v1150
    %v2176 = vunpack.c.l.b16 %v1151
    %v2177 = vunpack.c.l.b16 %v1152
    %v2178 = vunpack.c.l.b16 %v1153
    %v2179 = vunpack.c.l.b16 %v1154
    %v2180 = vunpack.c.l.b16 %v1155
    %v2181 = vunpack.c.l.b16 %v1156
    %v2182 = vunpack.c.l.b16 %v1157
    %v2183 = vunpack.c.l.b16 %v1158
    %v2184 = vunpack.c.l.b16 %v1159
    %v2185 = vunpack.c.l.b16 %v1160
    %v2186 = vunpack.c.l.b16 %v1161
    %v2187 = vunpack.c.l.b16 %v1162
    %v2188 = vunpack.c.l.b16 %v1163
    %v2189 = vunpack.c.l.b16 %v1164
    %v2190 = vunpack.c.l.b16 %v1165
    %v2191 = vunpack.c.l.b16 %v1166
    %v2192 = vunpack.c.l.b16 %v1167
    %v2193 = vunpack.c.l.b16 %v1168
    %v2194 = vunpack.c.l.b16 %v1169
    %v2195 = vunpack.c.l.b16 %v1170
    %v2196 = vunpack.c.l.b16 %v1171
    %v2197 = vunpack.c.l.b16 %v1172
    %v2198 = vunpack.c.l.b16 %v1173
    %v2199 = vunpack.c.l.b16 %v1174
    %v2200 = vunpack.c.l.b16 %v1175
    %v2201 = vunpack.c.l.b16 %v1176
    %v2202 = vunpack.c.l.b16 %v1177
    %v2203 = vunpack.c.l.b16 %v1178
    %v2204 = vunpack.c.l.b16 %v1179
    %v2205 = vunpack.c.l.b16 %v1180
    %v2206 = vunpack.c.l.b16 %v1181
    %v2207 = vunpack.c.l.b16 %v1182
    %v2208 = vunpack.c.l.b16 %v1183
    %v2209 = vunpack.c.l.b16 %v1184
    %v2210 = vunpack.c.l.b16 %v1185
    %v2211 = vunpack.c.l.b16 %v1186
    %v2212 = vunpack.c.l.b16 %v1187
    %v2213 = vunpack.c.l.b16 %v1188
    %v2214 = vunpack.c.l.b16 %v1189
    %v2215 = vunpack.c.l.b16 %v1190
    %v2216 = vunpack.c.l.b16 %v1191
    %v2217 = vunpack.c.l.b16 %v1192
    %v2218 = vunpack.c.l.b16 %v1193
    %v2219 = vunpack.c.l.b16 %v1194
    %v2220 = vunpack.c.l.b16 %v1195
    %v2221 = vunpack.c.l.b16 %v1196
    %v2222 = vunpack.c.l.b16 %v1197
    %v2223 = vunpack.c.l.b16 %v1198
    %v2224 = vunpack.c.l.b16 %v1199
    %v2225 = vunpack.c.l.b16 %v1200
    %v2226 = vunpack.c.l.b16 %v1201
    %v2227 = vunpack.c.l.b16 %v1202
    %v2228 = vunpack.c.l.b16 %v1203
    %v2229 = vunpack.c.l.b16 %v1204
    %v2230 = vunpack.c.l.b16 %v1205
    %v2231 = vunpack.c.l.b16 %v1206
    %v2232 = vunpack.c.l.b16 %v1207
    %v2233 = vunpack.c.l.b16 %v1208
    %v2234 = vunpack.c.l.b16 %v1209
    %v2235 = vunpack.c.l.b16 %v1210
    %v2236 = vunpack.c.l.b16 %v1211
    %v2237 = vunpack.c.l.b16 %v1212
    %v2238 = vunpack.c.l.b16 %v1213
    %v2239 = vunpack.c.l.b16 %v1214
    %v2240 = vunpack.c.l.b16 %v1215
    %v2241 = vunpack.c.l.b16 %v1216
    %v2242 = vunpack.c.l.b16 %v1217
    %v2243 = vunpack.c.l.b16 %v1218
    %v2244 = vunpack.c.l.b16 %v1219
    %v2245 = vunpack.c.l.b16 %v1220
    %v2246 = vunpack.c.l.b16 %v1221
    %v2247 = vunpack.c.l.b16 %v1222
    %v2248 = vunpack.c.l.b16 %v1223
    %v2249 = vunpack.c.l.b16 %v1224
    %v2250 = vunpack.c.l.b16 %v1225
    %v2251 = vunpack.c.l.b16 %v1226
    %v2252 = vunpack.c.l.b16 %v1227
    %v2253 = vunpack.c.l.b16 %v1228
    %v2254 = vunpack.c.l.b16 %v1229
    %v2255 = vunpack.c.l.b16 %v1230
    %v2256 = vunpack.c.l.b16 %v1231
    %v2257 = vunpack.c.l.b16 %v1232
    %v2258 = vunpack.c.l.b16 %v1233
    %v2259 = vunpack.c.l.b16 %v1234
    %v2260 = vunpack.c.l.b16 %v1235
    %v2261 = vunpack.c.l.b16 %v1236
    %v2262 = vunpack.c.l.b16 %v1237
    %v2263 = vunpack.c.l.b16 %v1238
    %v2264 = vunpack.c.l.b16 %v1239
    %v2265 = vunpack.c.l.b16 %v1240
    %v2266 = vunpack.c.l.b16 %v1241
    %v2267 = vunpack.c.l.b16 %v1242
    %v2268 = vunpack.c.l.b16 %v1243
    %v2269 = vunpack.c.l.b16 %v1244
    %v2270 = vunpack.c.l.b16 %v1245
    %v2271 = vunpack.c.l.b16 %v1246
    %v2272 = vunpack.c.l.b16 %v1247
    %v2273 = vunpack.c.l.b16 %v1248
    %v2274 = vunpack.c.l.b16 %v1249
    %v2275 = vunpack.c.l.b16 %v1250
    %v2276 = vunpack.c.l.b16 %v1251
    %v2277 = vunpack.c.l.b16 %v1252
    %v2278 = vunpack.c.l.b16 %v1253
    %v2279 = vunpack.c.l.b16 %v1254
    %v2280 = vunpack.c.l.b16 %v1255
    %v2281 = vunpack.c.l.b16 %v1256
    %v2282 = vunpack.c.l.b16 %v1257
    %v2283 = vunpack.c.l.b16 %v1258
    %v2284 = vunpack.c.l.b16 %v1259
    %v2285 = vunpack.c.l.b16 %v1260
    %v2286 = vunpack.c.l.b16 %v1261
    %v2287 = vunpack.c.l.b16 %v1262
    %v2288 = vunpack.c.l.b16 %v1263
    %v2289 = vunpack.c.l.b16 %v1264
    %v2290 = vunpack.c.l.b16 %v1265
    %v2291 = vunpack.c.l.b16 %v1266
    %v2292 = vunpack.c.l.b16 %v1267
    %v2293 = vunpack.c.l.b16 %v1268
    %v2294 = vunpack.c.l.b16 %v1269
    %v2295 = vunpack.c.l.b16 %v1270
    %v2296 = vunpack.c.l.b16 %v1271
    %v2297 = vunpack.c.l.b16 %v1272
    %v2298 = vunpack.c.l.b16 %v1273
    %v2299 = vunpack.c.l.b16 %v1274
    %v2300 = vunpack.c.l.b16 %v1275
    %v2301 = vunpack.c.l.b16 %v1276
    %v2302 = vunpack.c.l.b16 %v1277
    %v2303 = vunpack.c.l.b16 %v1278
    %v2304 = vunpack.c.l.b16 %v1279
    %v2305 = vunpack.c.l.b16 %v1280
    %v2306 = vunpack.c.l.b16 %v1281
    %v2307 = vunpack.c.l.b16 %v1282
    %v2308 = vunpack.c.l.b16 %v1283
    %v2309 = vunpack.c.l.b16 %v1284
    %v2310 = vunpack.c.l.b16 %v1285
    %v2311 = vunpack.c.l.b16 %v1286
    %v2312 = vunpack.c.l.b16 %v1287
    %v2313 = vunpack.c.l.b16 %v1288
    %v2314 = vunpack.c.l.b16 %v1289
    %v2315 = vunpack.c.l.b16 %v1290
    %v2316 = vunpack.c.l.b16 %v1291
    %v2317 = vunpack.c.l.b16 %v1292
    %v2318 = vunpack.c.l.b16 %v1293
    %v2319 = vunpack.c.l.b16 %v1294
    %v2320 = vunpack.c.l.b16 %v1295
    %v2321 = vunpack.c.l.b16 %v1296
    %v2322 = vunpack.c.l.b16 %v1297
    %v2323 = vunpack.c.l.b16 %v1298
    %v2324 = vunpack.c.l.b16 %v1299
    %v2325 = vunpack.c.l.b16 %v1300
    %v2326 = vunpack.c.l.b16 %v1301
    %v2327 = vunpack.c.l.b16 %v1302
    %v2328 = vunpack.c.l.b16 %v1303
    %v2329 = vunpack.c.l.b16 %v1304
    %v2330 = vunpack.c.l.b16 %v1305
    %v2331 = vunpack.c.l.b16 %v1306
    %v2332 = vunpack.c.l.b16 %v1307
    %v2333 = vunpack.c.l.b16 %v1308
    %v2334 = vunpack.c.l.b16 %v1309
    %v2335 = vunpack.c.l.b16 %v1310
    %v2336 = vunpack.c.l.b16 %v1311
    %v2337 = vunpack.c.l.b16 %v1312
    %v2338 = vunpack.c.l.b16 %v1313
    %v2339 = vunpack.c.l.b16 %v1314
    %v2340 = vunpack.c.l.b16 %v1315
    %v2341 = vunpack.c.l.b16 %v1316
    %v2342 = vunpack.c.l.b16 %v1317
    %v2343 = vunpack.c.l.b16 %v1318
    %v2344 = vunpack.c.l.b16 %v1319
    %v2345 = vunpack.c.l.b16 %v1320
    %v2346 = vunpack.c.l.b16 %v1321
    %v2347 = vunpack.c.l.b16 %v1322
    %v2348 = vunpack.c.l.b16 %v1323
    %v2349 = vunpack.c.l.b16 %v1324
    %v2350 = vunpack.c.l.b16 %v1325
    %v2351 = vunpack.c.l.b16 %v1326
    %v2352 = vunpack.c.l.b16 %v1327
    %v2353 = vunpack.c.l.b16 %v1328
    %v2354 = vunpack.c.l.b16 %v1329
    %v2355 = vunpack.c.l.b16 %v1330
    %v2356 = vunpack.c.l.b16 %v1331
    %v2357 = vunpack.c.l.b16 %v1332
    %v2358 = vunpack.c.l.b16 %v1333
    %v2359 = vunpack.c.l.b16 %v1334
    %v2360 = vunpack.c.l.b16 %v1335
    %v2361 = vunpack.c.l.b16 %v1336
    %v2362 = vunpack.c.l.b16 %v1337
    %v2363 = vunpack.c.l.b16 %v1338
    %v2364 = vunpack.c.l.b16 %v1339
    %v2365 = vunpack.c.l.b16 %v1340
    %v2366 = vunpack.c.l.b16 %v1341
    %v2367 = vunpack.c.l.b16 %v1342
    %v2368 = vunpack.c.l.b16 %v1343
    %v2369 = vunpack.c.l.b16 %v1344
    %v2370 = vunpack.c.l.b16 %v1345
    %v2371 = vunpack.c.l.b16 %v1346
    %v2372 = vunpack.c.l.b16 %v1347
    %v2373 = vunpack.c.l.b16 %v1348
    %v2374 = vunpack.c.l.b16 %v1349
    %v2375 = vunpack.c.l.b16 %v1350
    %v2376 = vunpack.c.l.b16 %v1351
    %v2377 = vunpack.c.l.b16 %v1352
    %v2378 = vunpack.c.l.b16 %v1353
    %v2379 = vunpack.c.l.b16 %v1354
    %v2380 = vunpack.c.l.b16 %v1355
    %v2381 = vunpack.c.l.b16 %v1356
    %v2382 = vunpack.c.l.b16 %v1357
    %v2383 = vunpack.c.l.b16 %v1358
    %v2384 = vunpack.c.l.b16 %v1359
    %v2385 = vunpack.c.l.b16 %v1360
    %v2386 = vunpack.c.l.b16 %v1361
    %v2387 = vunpack.c.l.b16 %v1362
    %v2388 = vunpack.c.l.b16 %v1363
    %v2389 = vunpack.c.l.b16 %v1364
    %v2390 = vunpack.c.l.b16 %v1365
    %v2391 = vunpack.c.l.b16 %v1366
    %v2392 = vunpack.c.l.b16 %v1367
    %v2393 = vunpack.c.l.b16 %v1368
    %v2394 = vunpack.c.l.b16 %v1369
    %v2395 = vunpack.c.l.b16 %v1370
    %v2396 = vunpack.c.l.b16 %v1371
    %v2397 = vunpack.c.l.b16 %v1372
    %v2398 = vunpack.c.l.b16 %v1373
    %v2399 = vunpack.c.l.b16 %v1374
    %v2400 = vunpack.c.l.b16 %v1375
    %v2401 = vunpack.c.l.b16 %v1376
    %v2402 = vunpack.c.l.b16 %v1377
    %v2403 = vunpack.c.l.b16 %v1378
    %v2404 = vunpack.c.l.b16 %v1379
    %v2405 = vunpack.c.l.b16 %v1380
    %v2406 = vunpack.c.l.b16 %v1381
    %v2407 = vunpack.c.l.b16 %v1382
    %v2408 = vunpack.c.l.b16 %v1383
    %v2409 = vunpack.c.l.b16 %v1384
    %v2410 = vunpack.c.l.b16 %v1385
    %v2411 = vunpack.c.l.b16 %v1386
    %v2412 = vunpack.c.l.b16 %v1387
    %v2413 = vunpack.c.l.b16 %v1388
    %v2414 = vunpack.c.l.b16 %v1389
    %v2415 = vunpack.c.l.b16 %v1390
    %v2416 = vunpack.c.l.b16 %v1391
    %v2417 = vunpack.c.l.b16 %v1392
    %v2418 = vunpack.c.l.b16 %v1393
    %v2419 = vunpack.c.l.b16 %v1394
    %v2420 = vunpack.c.l.b16 %v1395
    %v2421 = vunpack.c.l.b16 %v1396
    %v2422 = vunpack.c.l.b16 %v1397
    %v2423 = vunpack.c.l.b16 %v1398
    %v2424 = vunpack.c.l.b16 %v1399
    %v2425 = vunpack.c.l.b16 %v1400
    %v2426 = vunpack.c.l.b16 %v1401
    %v2427 = vunpack.c.l.b16 %v1402
    %v2428 = vunpack.c.l.b16 %v1403
    %v2429 = vunpack.c.l.b16 %v1404
    %v2430 = vunpack.c.l.b16 %v1405
    %v2431 = vunpack.c.l.b16 %v1406
    %v2432 = vunpack.c.l.b16 %v1407
    %v2433 = vunpack.c.l.b16 %v1408
    %v2434 = vunpack.c.l.b16 %v1409
    %v2435 = vunpack.c.l.b16 %v1410
    %v2436 = vunpack.c.l.b16 %v1411
    %v2437 = vunpack.c.l.b16 %v1412
    %v2438 = vunpack.c.l.b16 %v1413
    %v2439 = vunpack.c.l.b16 %v1414
    %v2440 = vunpack.c.l.b16 %v1415
    %v2441 = vunpack.c.l.b16 %v1416
    %v2442 = vunpack.c.l.b16 %v1417
    %v2443 = vunpack.c.l.b16 %v1418
    %v2444 = vunpack.c.l.b16 %v1419
    %v2445 = vunpack.c.l.b16 %v1420
    %v2446 = vunpack.c.l.b16 %v1421
    %v2447 = vunpack.c.l.b16 %v1422
    %v2448 = vunpack.c.l.b16 %v1423
    %v2449 = vunpack.c.l.b16 %v1424
    %v2450 = vunpack.c.l.b16 %v1425
    %v2451 = vunpack.c.l.b16 %v1426
    %v2452 = vunpack.c.l.b16 %v1427
    %v2453 = vunpack.c.l.b16 %v1428
    %v2454 = vunpack.c.l.b16 %v1429
    %v2455 = vunpack.c.l.b16 %v1430
    %v2456 = vunpack.c.l.b16 %v1431
    %v2457 = vunpack.c.l.b16 %v1432
    %v2458 = vunpack.c.l.b16 %v1433
    %v2459 = vunpack.c.l.b16 %v1434
    %v2460 = vunpack.c.l.b16 %v1435
    %v2461 = vunpack.c.l.b16 %v1436
    %v2462 = vunpack.c.l.b16 %v1437
    %v2463 = vunpack.c.l.b16 %v1438
    %v2464 = vunpack.c.l.b16 %v1439
    %v2465 = vunpack.c.l.b16 %v1440
    %v2466 = vunpack.c.l.b16 %v1441
    %v2467 = vunpack.c.l.b16 %v1442
    %v2468 = vunpack.c.l.b16 %v1443
    %v2469 = vunpack.c.l.b16 %v1444
    %v2470 = vunpack.c.l.b16 %v1445
    %v2471 = vunpack.c.l.b16 %v1446
    %v2472 = vunpack.c.l.b16 %v1447
    %v2473 = vunpack.c.l.b16 %v1448
    %v2474 = vunpack.c.l.b16 %v1449
    %v2475 = vunpack.c.l.b16 %v1450
    %v2476 = vunpack.c.l.b16 %v1451
    %v2477 = vunpack.c.l.b16 %v1452
    %v2478 = vunpack.c.l.b16 %v1453
    %v2479 = vunpack.c.l.b16 %v1454
    %v2480 = vunpack.c.l.b16 %v1455
    %v2481 = vunpack.c.l.b16 %v1456
    %v2482 = vunpack.c.l.b16 %v1457
    %v2483 = vunpack.c.l.b16 %v1458
    %v2484 = vunpack.c.l.b16 %v1459
    %v2485 = vunpack.c.l.b16 %v1460
    %v2486 = vunpack.c.l.b16 %v1461
    %v2487 = vunpack.c.l.b16 %v1462
    %v2488 = vunpack.c.l.b16 %v1463
    %v2489 = vunpack.c.l.b16 %v1464
    %v2490 = vunpack.c.l.b16 %v1465
    %v2491 = vunpack.c.l.b16 %v1466
    %v2492 = vunpack.c.l.b16 %v1467
    %v2493 = vunpack.c.l.b16 %v1468
    %v2494 = vunpack.c.l.b16 %v1469
    %v2495 = vunpack.c.l.b16 %v1470
    %v2496 = vunpack.c.l.b16 %v1471
    %v2497 = vunpack.c.l.b16 %v1472
    %v2498 = vunpack.c.l.b16 %v1473
    %v2499 = vunpack.c.l.b16 %v1474
    %v2500 = vunpack.c.l.b16 %v1475
    %v2501 = vunpack.c.l.b16 %v1476
    %v2502 = vunpack.c.l.b16 %v1477
    %v2503 = vunpack.c.l.b16 %v1478
    %v2504 = vunpack.c.l.b16 %v1479
    %v2505 = vunpack.c.l.b16 %v1480
    %v2506 = vunpack.c.l.b16 %v1481
    %v2507 = vunpack.c.l.b16 %v1482
    %v2508 = vunpack.c.l.b16 %v1483
    %v2509 = vunpack.c.l.b16 %v1484
    %v2510 = vunpack.c.l.b16 %v1485
    %v2511 = vunpack.c.l.b16 %v1486
    %v2512 = vunpack.c.l.b16 %v1487
    %v2513 = vunpack.c.l.b16 %v1488
    %v2514 = vunpack.c.l.b16 %v1489
    %v2515 = vunpack.c.l.b16 %v1490
    %v2516 = vunpack.c.l.b16 %v1491
    %v2517 = vunpack.c.l.b16 %v1492
    %v2518 = vunpack.c.l.b16 %v1493
    %v2519 = vunpack.c.l.b16 %v1494
    %v2520 = vunpack.c.l.b16 %v1495
    %v2521 = vunpack.c.l.b16 %v1496
    %v2522 = vunpack.c.l.b16 %v1497
    %v2523 = vunpack.c.l.b16 %v1498
    %v2524 = vunpack.c.l.b16 %v1499
    %v2525 = vunpack.c.l.b16 %v1500
    %v2526 = vunpack.c.l.b16 %v1501
    %v2527 = vunpack.c.l.b16 %v1502
    %v2528 = vunpack.c.l.b16 %v1503
    %v2529 = vunpack.c.l.b16 %v1504
    %v2530 = vunpack.c.l.b16 %v1505
    %v2531 = vunpack.c.l.b16 %v1506
    %v2532 = vunpack.c.l.b16 %v1507
    %v2533 = vunpack.c.l.b16 %v1508
    %v2534 = vunpack.c.l.b16 %v1509
    %v2535 = vunpack.c.l.b16 %v1510
    %v2536 = vunpack.c.l.b16 %v1511
    %v2537 = vunpack.c.l.b16 %v1512
    %v2538 = vunpack.c.l.b16 %v1513
    %v2539 = vunpack.c.l.b16 %v1514
    %v2540 = vunpack.c.l.b16 %v1515
    %v2541 = vunpack.c.l.b16 %v1516
    %v2542 = vunpack.c.l.b16 %v1517
    %v2543 = vunpack.c.l.b16 %v1518
    %v2544 = vunpack.c.l.b16 %v1519
    %v2545 = vunpack.c.l.b16 %v1520
    %v2546 = vunpack.c.l.b16 %v1521
    %v2547 = vunpack.c.l.b16 %v1522
    %v2548 = vunpack.c.l.b16 %v1523
    %v2549 = vunpack.c.l.b16 %v1524
    %v2550 = vunpack.c.l.b16 %v1525
    %v2551 = vunpack.c.l.b16 %v1526
    %v2552 = vunpack.c.l.b16 %v1527
    %v2553 = vunpack.c.l.b16 %v1528
    %v2554 = vunpack.c.l.b16 %v1529
    %v2555 = vunpack.c.l.b16 %v1530
    %v2556 = vunpack.c.l.b16 %v1531
    %v2557 = vunpack.c.l.b16 %v1532
    %v2558 = vunpack.c.l.b16 %v1533
    %v2559 = vunpack.c.l.b16 %v1534
    %v2560 = vunpack.c.l.b16 %v1535
    %v2561 = vunpack.c.l.b16 %v1536
    %v2562 = vunpack.c.l.b16 %v1537
    %v2563 = vunpack.c.l.b16 %v1538
    %v2564 = vunpack.c.l.b16 %v1539
    %v2565 = vunpack.c.l.b16 %v1540
    %v2566 = vunpack.c.l.b16 %v1541
    %v2567 = vunpack.c.l.b16 %v1542
    %v2568 = vunpack.c.l.b16 %v1543
    %v2569 = vunpack.c.l.b16 %v1544
    %v2570 = vunpack.c.l.b16 %v1545
    %v2571 = vunpack.c.l.b16 %v1546
    %v2572 = vunpack.c.l.b16 %v1547
    %v2573 = vunpack.c.l.b16 %v1548
    %v2574 = vunpack.c.l.b16 %v1549
    %v2575 = vunpack.c.l.b16 %v1550
    %v2576 = vunpack.c.l.b16 %v1551
    %v2577 = vunpack.c.l.b16 %v1552
    %v2578 = vunpack.c.l.b16 %v1553
    %v2579 = vunpack.c.l.b16 %v1554
    %v2580 = vunpack.c.l.b16 %v1555
    %v2581 = vunpack.c.l.b16 %v1556
    %v2582 = vunpack.c.l.b16 %v1557
    %v2583 = vunpack.c.l.b16 %v1558
    %v2584 = vunpack.c.l.b16 %v1559
    %v2585 = vunpack.c.l.b16 %v1560
    %v2586 = vunpack.c.l.b16 %v1561
    %v2587 = vunpack.c.l.b16 %v1562
    %v2588 = vunpack.c.l.b16 %v1563
    %v2589 = vunpack.c.l.b16 %v1564
    %v2590 = vunpack.c.l.b16 %v1565
    %v2591 = vunpack.c.l.b16 %v1566
    %v2592 = vunpack.c.l.b16 %v1567
    %v2593 = vunpack.c.l.b16 %v1568
    %v2594 = vunpack.c.l.b16 %v1569
    %v2595 = vunpack.c.l.b16 %v1570
    %v2596 = vunpack.c.l.b16 %v1571
    %v2597 = vunpack.c.l.b16 %v1572
    %v2598 = vunpack.c.l.b16 %v1573
    %v2599 = vunpack.c.l.b16 %v1574
    %v2600 = vunpack.c.l.b16 %v1575
    %v2601 = vunpack.c.l.b16 %v1576
    %v2602 = vunpack.c.l.b16 %v1577
    %v2603 = vunpack.c.l.b16 %v1578
    %v2604 = vunpack.c.l.b16 %v1579
    %v2605 = vunpack.c.l.b16 %v1580
    %v2606 = vunpack.c.l.b16 %v1581
    %v2607 = vunpack.c.l.b16 %v1582
    %v2608 = vunpack.c.l.b16 %v1583
    %v2609 = vunpack.c.l.b16 %v1584
    %v2610 = vunpack.c.l.b16 %v1585
    %v2611 = vunpack.c.l.b16 %v1586
    %v2612 = vunpack.c.l.b16 %v1587
    %v2613 = vunpack.c.l.b16 %v1588
    %v2614 = vunpack.c.l.b16 %v1589
    %v2615 = vunpack.c.l.b16 %v1590
    %v2616 = vunpack.c.l.b16 %v1591
    %v2617 = vunpack.c.l.b16 %v1592
    %v2618 = vunpack.c.l.b16 %v1593
    %v2619 = vunpack.c.l.b16 %v1594
    %v2620 = vunpack.c.l.b16 %v1595
    %v2621 = vunpack.c.l.b16 %v1596
    %v2622 = vunpack.c.l.b16 %v1597
    %v2623 = vunpack.c.l.b16 %v1598
    %v2624 = vunpack.c.l.b16 %v1599
    %v2625 = vunpack.c.l.b16 %v1600
    %v2626 = vunpack.c.l.b16 %v1601
    %v2627 = vunpack.c.l.b16 %v1602
    %v2628 = vunpack.c.l.b16 %v1603
    %v2629 = vunpack.c.l.b16 %v1604
    %v2630 = vunpack.c.l.b16 %v1605
    %v2631 = vunpack.c.l.b16 %v1606
    %v2632 = vunpack.c.l.b16 %v1607
    %v2633 = vunpack.c.l.b16 %v1608
    %v2634 = vunpack.c.l.b16 %v1609
    %v2635 = vunpack.c.l.b16 %v1610
    %v2636 = vunpack.c.l.b16 %v1611
    %v2637 = vunpack.c.l.b16 %v1612
    %v2638 = vunpack.c.l.b16 %v1613
    %v2639 = vunpack.c.l.b16 %v1614
    %v2640 = vunpack.c.l.b16 %v1615
    %v2641 = vunpack.c.l.b16 %v1616
    %v2642 = vunpack.c.l.b16 %v1617
    %v2643 = vunpack.c.l.b16 %v1618
    %v2644 = vunpack.c.l.b16 %v1619
    %v2645 = vunpack.c.l.b16 %v1620
    %v2646 = vunpack.c.l.b16 %v1621
    %v2647 = vunpack.c.l.b16 %v1622
    %v2648 = vunpack.c.l.b16 %v1623
    %v2649 = vunpack.c.l.b16 %v1624
    %v2650 = vunpack.c.l.b16 %v1625
    %v2651 = vunpack.c.l.b16 %v1626
    %v2652 = vunpack.c.l.b16 %v1627
    %v2653 = vunpack.c.l.b16 %v1628
    %v2654 = vunpack.c.l.b16 %v1629
    %v2655 = vunpack.c.l.b16 %v1630
    %v2656 = vunpack.c.l.b16 %v1631
    %v2657 = vunpack.c.l.b16 %v1632
    %v2658 = vunpack.c.l.b16 %v1633
    %v2659 = vunpack.c.l.b16 %v1634
    %v2660 = vunpack.c.l.b16 %v1635
    %v2661 = vunpack.c.l.b16 %v1636
    %v2662 = vunpack.c.l.b16 %v1637
    %v2663 = vunpack.c.l.b16 %v1638
    %v2664 = vunpack.c.l.b16 %v1639
    %v2665 = vunpack.c.l.b16 %v1640
    %v2666 = vunpack.c.l.b16 %v1641
    %v2667 = vunpack.c.l.b16 %v1642
    %v2668 = vpack.c.b16 %v2157, %v2156
    %v2669 = vpack.c.b16 %v2159, %v2158
    %v2670 = vpack.c.b16 %v2161, %v2160
    %v2671 = vpack.c.b16 %v2163, %v2162
    %v2672 = vpack.c.b16 %v2165, %v2164
    %v2673 = vpack.c.b16 %v2167, %v2166
    %v2674 = vpack.c.b16 %v2169, %v2168
    %v2675 = vpack.c.b16 %v2171, %v2170
    %v2676 = vpack.c.b16 %v2173, %v2172
    %v2677 = vpack.c.b16 %v2175, %v2174
    %v2678 = vpack.c.b16 %v2177, %v2176
    %v2679 = vpack.c.b16 %v2179, %v2178
    %v2680 = vpack.c.b16 %v2181, %v2180
    %v2681 = vpack.c.b16 %v2183, %v2182
    %v2682 = vpack.c.b16 %v2185, %v2184
    %v2683 = vpack.c.b16 %v2187, %v2186
    %v2684 = vpack.c.b16 %v2189, %v2188
    %v2685 = vpack.c.b16 %v2191, %v2190
    %v2686 = vpack.c.b16 %v2193, %v2192
    %v2687 = vpack.c.b16 %v2195, %v2194
    %v2688 = vpack.c.b16 %v2197, %v2196
    %v2689 = vpack.c.b16 %v2199, %v2198
    %v2690 = vpack.c.b16 %v2201, %v2200
    %v2691 = vpack.c.b16 %v2203, %v2202
    %v2692 = vpack.c.b16 %v2205, %v2204
    %v2693 = vpack.c.b16 %v2207, %v2206
    %v2694 = vpack.c.b16 %v2209, %v2208
    %v2695 = vpack.c.b16 %v2211, %v2210
    %v2696 = vpack.c.b16 %v2213, %v2212
    %v2697 = vpack.c.b16 %v2215, %v2214
    %v2698 = vpack.c.b16 %v2217, %v2216
    %v2699 = vpack.c.b16 %v2219, %v2218
    %v2700 = vpack.c.b16 %v2221, %v2220
    %v2701 = vpack.c.b16 %v2223, %v2222
    %v2702 = vpack.c.b16 %v2225, %v2224
    %v2703 = vpack.c.b16 %v2227, %v2226
    %v2704 = vpack.c.b16 %v2229, %v2228
    %v2705 = vpack.c.b16 %v2231, %v2230
    %v2706 = vpack.c.b16 %v2233, %v2232
    %v2707 = vpack.c.b16 %v2235, %v2234
    %v2708 = vpack.c.b16 %v2237, %v2236
    %v2709 = vpack.c.b16 %v2239, %v2238
    %v2710 = vpack.c.b16 %v2241, %v2240
    %v2711 = vpack.c.b16 %v2243, %v2242
    %v2712 = vpack.c.b16 %v2245, %v2244
    %v2713 = vpack.c.b16 %v2247, %v2246
    %v2714 = vpack.c.b16 %v2249, %v2248
    %v2715 = vpack.c.b16 %v2251, %v2250
    %v2716 = vpack.c.b16 %v2253, %v2252
    %v2717 = vpack.c.b16 %v2255, %v2254
    %v2718 = vpack.c.b16 %v2257, %v2256
    %v2719 = vpack.c.b16 %v2259, %v2258
    %v2720 = vpack.c.b16 %v2261, %v2260
    %v2721 = vpack.c.b16 %v2263, %v2262
    %v2722 = vpack.c.b16 %v2265, %v2264
    %v2723 = vpack.c.b16 %v2267, %v2266
    %v2724 = vpack.c.b16 %v2269, %v2268
    %v2725 = vpack.c.b16 %v2271, %v2270
    %v2726 = vpack.c.b16 %v2273, %v2272
    %v2727 = vpack.c.b16 %v2275, %v2274
    %v2728 = vpack.c.b16 %v2277, %v2276
    %v2729 = vpack.c.b16 %v2279, %v2278
    %v2730 = vpack.c.b16 %v2281, %v2280
    %v2731 = vpack.c.b16 %v2283, %v2282
    %v2732 = vpack.c.b16 %v2285, %v2284
    %v2733 = vpack.c.b16 %v2287, %v2286
    %v2734 = vpack.c.b16 %v2289, %v2288
    %v2735 = vpack.c.b16 %v2291, %v2290
    %v2736 = vpack.c.b16 %v2293, %v2292
    %v2737 = vpack.c.b16 %v2295, %v2294
    %v2738 = vpack.c.b16 %v2297, %v2296
    %v2739 = vpack.c.b16 %v2299, %v2298
    %v2740 = vpack.c.b16 %v2301, %v2300
    %v2741 = vpack.c.b16 %v2303, %v2302
    %v2742 = vpack.c.b16 %v2305, %v2304
    %v2743 = vpack.c.b16 %v2307, %v2306
    %v2744 = vpack.c.b16 %v2309, %v2308
    %v2745 = vpack.c.b16 %v2311, %v2310
    %v2746 = vpack.c.b16 %v2313, %v2312
    %v2747 = vpack.c.b16 %v2315, %v2314
    %v2748 = vpack.c.b16 %v2317, %v2316
    %v2749 = vpack.c.b16 %v2319, %v2318
    %v2750 = vpack.c.b16 %v2321, %v2320
    %v2751 = vpack.c.b16 %v2323, %v2322
    %v2752 = vpack.c.b16 %v2325, %v2324
    %v2753 = vpack.c.b16 %v2327, %v2326
    %v2754 = vpack.c.b16 %v2329, %v2328
    %v2755 = vpack.c.b16 %v2331, %v2330
    %v2756 = vpack.c.b16 %v2333, %v2332
    %v2757 = vpack.c.b16 %v2335, %v2334
    %v2758 = vpack.c.b16 %v2337, %v2336
    %v2759 = vpack.c.b16 %v2339, %v2338
    %v2760 = vpack.c.b16 %v2341, %v2340
    %v2761 = vpack.c.b16 %v2343, %v2342
    %v2762 = vpack.c.b16 %v2345, %v2344
    %v2763 = vpack.c.b16 %v2347, %v2346
    %v2764 = vpack.c.b16 %v2349, %v2348
    %v2765 = vpack.c.b16 %v2351, %v2350
    %v2766 = vpack.c.b16 %v2353, %v2352
    %v2767 = vpack.c.b16 %v2355, %v2354
    %v2768 = vpack.c.b16 %v2357, %v2356
    %v2769 = vpack.c.b16 %v2359, %v2358
    %v2770 = vpack.c.b16 %v2361, %v2360
    %v2771 = vpack.c.b16 %v2363, %v2362
    %v2772 = vpack.c.b16 %v2365, %v2364
    %v2773 = vpack.c.b16 %v2367, %v2366
    %v2774 = vpack.c.b16 %v2369, %v2368
    %v2775 = vpack.c.b16 %v2371, %v2370
    %v2776 = vpack.c.b16 %v2373, %v2372
    %v2777 = vpack.c.b16 %v2375, %v2374
    %v2778 = vpack.c.b16 %v2377, %v2376
    %v2779 = vpack.c.b16 %v2379, %v2378
    %v2780 = vpack.c.b16 %v2381, %v2380
    %v2781 = vpack.c.b16 %v2383, %v2382
    %v2782 = vpack.c.b16 %v2385, %v2384
    %v2783 = vpack.c.b16 %v2387, %v2386
    %v2784 = vpack.c.b16 %v2389, %v2388
    %v2785 = vpack.c.b16 %v2391, %v2390
    %v2786 = vpack.c.b16 %v2393, %v2392
    %v2787 = vpack.c.b16 %v2395, %v2394
    %v2788 = vpack.c.b16 %v2397, %v2396
    %v2789 = vpack.c.b16 %v2399, %v2398
    %v2790 = vpack.c.b16 %v2401, %v2400
    %v2791 = vpack.c.b16 %v2403, %v2402
    %v2792 = vpack.c.b16 %v2405, %v2404
    %v2793 = vpack.c.b16 %v2407, %v2406
    %v2794 = vpack.c.b16 %v2409, %v2408
    %v2795 = vpack.c.b16 %v2411, %v2410
    %v2796 = vpack.c.b16 %v2413, %v2412
    %v2797 = vpack.c.b16 %v2415, %v2414
    %v2798 = vpack.c.b16 %v2417, %v2416
    %v2799 = vpack.c.b16 %v2419, %v2418
    %v2800 = vpack.c.b16 %v2421, %v2420
    %v2801 = vpack.c.b16 %v2423, %v2422
    %v2802 = vpack.c.b16 %v2425, %v2424
    %v2803 = vpack.c.b16 %v2427, %v2426
    %v2804 = vpack.c.b16 %v2429, %v2428
    %v2805 = vpack.c.b16 %v2431, %v2430
    %v2806 = vpack.c.b16 %v2433, %v2432
    %v2807 = vpack.c.b16 %v2435, %v2434
    %v2808 = vpack.c.b16 %v2437, %v2436
    %v2809 = vpack.c.b16 %v2439, %v2438
    %v2810 = vpack.c.b16 %v2441, %v2440
    %v2811 = vpack.c.b16 %v2443, %v2442
    %v2812 = vpack.c.b16 %v2445, %v2444
    %v2813 = vpack.c.b16 %v2447, %v2446
    %v2814 = vpack.c.b16 %v2449, %v2448
    %v2815 = vpack.c.b16 %v2451, %v2450
    %v2816 = vpack.c.b16 %v2453, %v2452
    %v2817 = vpack.c.b16 %v2455, %v2454
    %v2818 = vpack.c.b16 %v2457, %v2456
    %v2819 = vpack.c.b16 %v2459, %v2458
    %v2820 = vpack.c.b16 %v2461, %v2460
    %v2821 = vpack.c.b16 %v2463, %v2462
    %v2822 = vpack.c.b16 %v2465, %v2464
    %v2823 = vpack.c.b16 %v2467, %v2466
    %v2824 = vpack.c.b16 %v2469, %v2468
    %v2825 = vpack.c.b16 %v2471, %v2470
    %v2826 = vpack.c.b16 %v2473, %v2472
    %v2827 = vpack.c.b16 %v2475, %v2474
    %v2828 = vpack.c.b16 %v2477, %v2476
    %v2829 = vpack.c.b16 %v2479, %v2478
    %v2830 = vpack.c.b16 %v2481, %v2480
    %v2831 = vpack.c.b16 %v2483, %v2482
    %v2832 = vpack.c.b16 %v2485, %v2484
    %v2833 = vpack.c.b16 %v2487, %v2486
    %v2834 = vpack.c.b16 %v2489, %v2488
    %v2835 = vpack.c.b16 %v2491, %v2490
    %v2836 = vpack.c.b16 %v2493, %v2492
    %v2837 = vpack.c.b16 %v2495, %v2494
    %v2838 = vpack.c.b16 %v2497, %v2496
    %v2839 = vpack.c.b16 %v2499, %v2498
    %v2840 = vpack.c.b16 %v2501, %v2500
    %v2841 = vpack.c.b16 %v2503, %v2502
    %v2842 = vpack.c.b16 %v2505, %v2504
    %v2843 = vpack.c.b16 %v2507, %v2506
    %v2844 = vpack.c.b16 %v2509, %v2508
    %v2845 = vpack.c.b16 %v2511, %v2510
    %v2846 = vpack.c.b16 %v2513, %v2512
    %v2847 = vpack.c.b16 %v2515, %v2514
    %v2848 = vpack.c.b16 %v2517, %v2516
    %v2849 = vpack.c.b16 %v2519, %v2518
    %v2850 = vpack.c.b16 %v2521, %v2520
    %v2851 = vpack.c.b16 %v2523, %v2522
    %v2852 = vpack.c.b16 %v2525, %v2524
    %v2853 = vpack.c.b16 %v2527, %v2526
    %v2854 = vpack.c.b16 %v2529, %v2528
    %v2855 = vpack.c.b16 %v2531, %v2530
    %v2856 = vpack.c.b16 %v2533, %v2532
    %v2857 = vpack.c.b16 %v2535, %v2534
    %v2858 = vpack.c.b16 %v2537, %v2536
    %v2859 = vpack.c.b16 %v2539, %v2538
    %v2860 = vpack.c.b16 %v2541, %v2540
    %v2861 = vpack.c.b16 %v2543, %v2542
    %v2862 = vpack.c.b16 %v2545, %v2544
    %v2863 = vpack.c.b16 %v2547, %v2546
    %v2864 = vpack.c.b16 %v2549, %v2548
    %v2865 = vpack.c.b16 %v2551, %v2550
    %v2866 = vpack.c.b16 %v2553, %v2552
    %v2867 = vpack.c.b16 %v2555, %v2554
    %v2868 = vpack.c.b16 %v2557, %v2556
    %v2869 = vpack.c.b16 %v2559, %v2558
    %v2870 = vpack.c.b16 %v2561, %v2560
    %v2871 = vpack.c.b16 %v2563, %v2562
    %v2872 = vpack.c.b16 %v2565, %v2564
    %v2873 = vpack.c.b16 %v2567, %v2566
    %v2874 = vpack.c.b16 %v2569, %v2568
    %v2875 = vpack.c.b16 %v2571, %v2570
    %v2876 = vpack.c.b16 %v2573, %v2572
    %v2877 = vpack.c.b16 %v2575, %v2574
    %v2878 = vpack.c.b16 %v2577, %v2576
    %v2879 = vpack.c.b16 %v2579, %v2578
    %v2880 = vpack.c.b16 %v2581, %v2580
    %v2881 = vpack.c.b16 %v2583, %v2582
    %v2882 = vpack.c.b16 %v2585, %v2584
    %v2883 = vpack.c.b16 %v2587, %v2586
    %v2884 = vpack.c.b16 %v2589, %v2588
    %v2885 = vpack.c.b16 %v2591, %v2590
    %v2886 = vpack.c.b16 %v2593, %v2592
    %v2887 = vpack.c.b16 %v2595, %v2594
    %v2888 = vpack.c.b16 %v2597, %v2596
    %v2889 = vpack.c.b16 %v2599, %v2598
    %v2890 = vpack.c.b16 %v2601, %v2600
    %v2891 = vpack.c.b16 %v2603, %v2602
    %v2892 = vpack.c.b16 %v2605, %v2604
    %v2893 = vpack.c.b16 %v2607, %v2606
    %v2894 = vpack.c.b16 %v2609, %v2608
    %v2895 = vpack.c.b16 %v2611, %v2610
    %v2896 = vpack.c.b16 %v2613, %v2612
    %v2897 = vpack.c.b16 %v2615, %v2614
    %v2898 = vpack.c.b16 %v2617, %v2616
    %v2899 = vpack.c.b16 %v2619, %v2618
    %v2900 = vpack.c.b16 %v2621, %v2620
    %v2901 = vpack.c.b16 %v2623, %v2622
    %v2902 = vpack.c.b16 %v2625, %v2624
    %v2903 = vpack.c.b16 %v2627, %v2626
    %v2904 = vpack.c.b16 %v2629, %v2628
    %v2905 = vpack.c.b16 %v2631, %v2630
    %v2906 = vpack.c.b16 %v2633, %v2632
    %v2907 = vpack.c.b16 %v2635, %v2634
    %v2908 = vpack.c.b16 %v2637, %v2636
    %v2909 = vpack.c.b16 %v2639, %v2638
    %v2910 = vpack.c.b16 %v2641, %v2640
    %v2911 = vpack.c.b16 %v2643, %v2642
    %v2912 = vpack.c.b16 %v2645, %v2644
    %v2913 = vpack.c.b16 %v2647, %v2646
    %v2914 = vpack.c.b16 %v2649, %v2648
    %v2915 = vpack.c.b16 %v2651, %v2650
    %v2916 = vpack.c.b16 %v2653, %v2652
    %v2917 = vpack.c.b16 %v2655, %v2654
    %v2918 = vpack.c.b16 %v2657, %v2656
    %v2919 = vpack.c.b16 %v2659, %v2658
    %v2920 = vpack.c.b16 %v2661, %v2660
    %v2921 = vpack.c.b16 %v2663, %v2662
    %v2922 = vpack.c.b16 %v2665, %v2664
    %v2923 = vpack.c.b16 %v2667, %v2666
    %3180 = vmatprep.subr.bf16.mxu0 0
    %3181 = vmatpush1.bf16.msra.mxu0 %v2668
    %3182 = vmatprep.subr.bf16.mxu0 0
    %3183 = vmatpush1.bf16.msra.mxu0 %v2669
    %3184 = vmatprep.subr.bf16.mxu0 0
    %3185 = vmatpush1.bf16.msra.mxu0 %v2670
    %3186 = vmatprep.subr.bf16.mxu0 0
    %3187 = vmatpush1.bf16.msra.mxu0 %v2671
    %3188 = vmatprep.subr.bf16.mxu0 0
    %3189 = vmatpush1.bf16.msra.mxu0 %v2672
    %3190 = vmatprep.subr.bf16.mxu0 0
    %3191 = vmatpush1.bf16.msra.mxu0 %v2673
    %3192 = vmatprep.subr.bf16.mxu0 0
    %3193 = vmatpush1.bf16.msra.mxu0 %v2674
    %3194 = vmatprep.subr.bf16.mxu0 0
    %3195 = vmatpush1.bf16.msra.mxu0 %v2675
    %3196 = vmatprep.subr.bf16.mxu0 0
    %3197 = vmatpush1.bf16.msra.mxu0 %v2676
    %3198 = vmatprep.subr.bf16.mxu0 0
    %3199 = vmatpush1.bf16.msra.mxu0 %v2677
    %3200 = vmatprep.subr.bf16.mxu0 0
    %3201 = vmatpush1.bf16.msra.mxu0 %v2678
    %3202 = vmatprep.subr.bf16.mxu0 0
    %3203 = vmatpush1.bf16.msra.mxu0 %v2679
    %3204 = vmatprep.subr.bf16.mxu0 0
    %3205 = vmatpush1.bf16.msra.mxu0 %v2680
    %3206 = vmatprep.subr.bf16.mxu0 0
    %3207 = vmatpush1.bf16.msra.mxu0 %v2681
    %3208 = vmatprep.subr.bf16.mxu0 0
    %3209 = vmatpush1.bf16.msra.mxu0 %v2682
    %3210 = vmatprep.subr.bf16.mxu0 0
    %3211 = vmatpush1.bf16.msra.mxu0 %v2683
    %3212 = vmatprep.mubr.bf16.mxu0 %v1100
    %3213 = vmatmul.mubr.bf16.gmra.mrb[0].mxu0 %v1099
    %v3214 = vpop.f32.mrb[0].mxu0
    %v3215 = vadd.f32 %v1643, %v3214
    %v3216 = vpop.f32.mrb[0].mxu0
    %v3217 = vpop.f32.mrb[0].mxu0
    %v3218 = vpop.f32.mrb[0].mxu0
    %3219 = vdwg.mxu0
    %3220 = vmatprep.subr.bf16.mxu0 0
    %3221 = vmatpush1.bf16.msra.mxu0 %v2684
    %3222 = vmatprep.subr.bf16.mxu0 0
    %3223 = vmatpush1.bf16.msra.mxu0 %v2685
    %3224 = vmatprep.subr.bf16.mxu0 0
    %3225 = vmatpush1.bf16.msra.mxu0 %v2686
    %3226 = vmatprep.subr.bf16.mxu0 0
    %3227 = vmatpush1.bf16.msra.mxu0 %v2687
    %3228 = vmatprep.subr.bf16.mxu0 0
    %3229 = vmatpush1.bf16.msra.mxu0 %v2688
    %3230 = vmatprep.subr.bf16.mxu0 0
    %3231 = vmatpush1.bf16.msra.mxu0 %v2689
    %3232 = vmatprep.subr.bf16.mxu0 0
    %3233 = vmatpush1.bf16.msra.mxu0 %v2690
    %3234 = vmatprep.subr.bf16.mxu0 0
    %3235 = vmatpush1.bf16.msra.mxu0 %v2691
    %3236 = vmatprep.subr.bf16.mxu0 0
    %3237 = vmatpush1.bf16.msra.mxu0 %v2692
    %3238 = vmatprep.subr.bf16.mxu0 0
    %3239 = vmatpush1.bf16.msra.mxu0 %v2693
    %3240 = vmatprep.subr.bf16.mxu0 0
    %3241 = vmatpush1.bf16.msra.mxu0 %v2694
    %3242 = vmatprep.subr.bf16.mxu0 0
    %3243 = vmatpush1.bf16.msra.mxu0 %v2695
    %3244 = vmatprep.subr.bf16.mxu0 0
    %3245 = vmatpush1.bf16.msra.mxu0 %v2696
    %3246 = vmatprep.subr.bf16.mxu0 0
    %3247 = vmatpush1.bf16.msra.mxu0 %v2697
    %3248 = vmatprep.subr.bf16.mxu0 0
    %3249 = vmatpush1.bf16.msra.mxu0 %v2698
    %3250 = vmatprep.subr.bf16.mxu0 0
    %3251 = vmatpush1.bf16.msra.mxu0 %v2699
    %3252 = vmatprep.mubr.bf16.mxu0 %v1102
    %3253 = vmatmul.mubr.bf16.gmra.mrb[0].mxu0 %v1101
    %v3254 = vpop.f32.mrb[0].mxu0
    %v3255 = vadd.f32 %v3215, %v3254
    %v3256 = vpop.f32.mrb[0].mxu0
    %v3257 = vpop.f32.mrb[0].mxu0
    %v3258 = vpop.f32.mrb[0].mxu0
    %3259 = vdwg.mxu0
    %3260 = vmatprep.subr.bf16.mxu0 0
    %3261 = vmatpush1.bf16.msra.mxu0 %v2700
    %3262 = vmatprep.subr.bf16.mxu0 0
    %3263 = vmatpush1.bf16.msra.mxu0 %v2701
    %3264 = vmatprep.subr.bf16.mxu0 0
    %3265 = vmatpush1.bf16.msra.mxu0 %v2702
    %3266 = vmatprep.subr.bf16.mxu0 0
    %3267 = vmatpush1.bf16.msra.mxu0 %v2703
    %3268 = vmatprep.subr.bf16.mxu0 0
    %3269 = vmatpush1.bf16.msra.mxu0 %v2704
    %3270 = vmatprep.subr.bf16.mxu0 0
    %3271 = vmatpush1.bf16.msra.mxu0 %v2705
    %3272 = vmatprep.subr.bf16.mxu0 0
    %3273 = vmatpush1.bf16.msra.mxu0 %v2706
    %3274 = vmatprep.subr.bf16.mxu0 0
    %3275 = vmatpush1.bf16.msra.mxu0 %v2707
    %3276 = vmatprep.subr.bf16.mxu0 0
    %3277 = vmatpush1.bf16.msra.mxu0 %v2708
    %3278 = vmatprep.subr.bf16.mxu0 0
    %3279 = vmatpush1.bf16.msra.mxu0 %v2709
    %3280 = vmatprep.subr.bf16.mxu0 0
    %3281 = vmatpush1.bf16.msra.mxu0 %v2710
    %3282 = vmatprep.subr.bf16.mxu0 0
    %3283 = vmatpush1.bf16.msra.mxu0 %v2711
    %3284 = vmatprep.subr.bf16.mxu0 0
    %3285 = vmatpush1.bf16.msra.mxu0 %v2712
    %3286 = vmatprep.subr.bf16.mxu0 0
    %3287 = vmatpush1.bf16.msra.mxu0 %v2713
    %3288 = vmatprep.subr.bf16.mxu0 0
    %3289 = vmatpush1.bf16.msra.mxu0 %v2714
    %3290 = vmatprep.subr.bf16.mxu0 0
    %3291 = vmatpush1.bf16.msra.mxu0 %v2715
    %3292 = vmatprep.mubr.bf16.mxu0 %v1104
    %3293 = vmatmul.mubr.bf16.gmra.mrb[0].mxu0 %v1103
    %v3294 = vpop.f32.mrb[0].mxu0
    %v3295 = vadd.f32 %v3255, %v3294
    %v3296 = vpop.f32.mrb[0].mxu0
    %v3297 = vpop.f32.mrb[0].mxu0
    %v3298 = vpop.f32.mrb[0].mxu0
    %3299 = vdwg.mxu0
    %3300 = vmatprep.subr.bf16.mxu0 0
    %3301 = vmatpush1.bf16.msra.mxu0 %v2716
    %3302 = vmatprep.subr.bf16.mxu0 0
    %3303 = vmatpush1.bf16.msra.mxu0 %v2717
    %3304 = vmatprep.subr.bf16.mxu0 0
    %3305 = vmatpush1.bf16.msra.mxu0 %v2718
    %3306 = vmatprep.subr.bf16.mxu0 0
    %3307 = vmatpush1.bf16.msra.mxu0 %v2719
    %3308 = vmatprep.subr.bf16.mxu0 0
    %3309 = vmatpush1.bf16.msra.mxu0 %v2720
    %3310 = vmatprep.subr.bf16.mxu0 0
    %3311 = vmatpush1.bf16.msra.mxu0 %v2721
    %3312 = vmatprep.subr.bf16.mxu0 0
    %3313 = vmatpush1.bf16.msra.mxu0 %v2722
    %3314 = vmatprep.subr.bf16.mxu0 0
    %3315 = vmatpush1.bf16.msra.mxu0 %v2723
    %3316 = vmatprep.subr.bf16.mxu0 0
    %3317 = vmatpush1.bf16.msra.mxu0 %v2724
    %3318 = vmatprep.subr.bf16.mxu0 0
    %3319 = vmatpush1.bf16.msra.mxu0 %v2725
    %3320 = vmatprep.subr.bf16.mxu0 0
    %3321 = vmatpush1.bf16.msra.mxu0 %v2726
    %3322 = vmatprep.subr.bf16.mxu0 0
    %3323 = vmatpush1.bf16.msra.mxu0 %v2727
    %3324 = vmatprep.subr.bf16.mxu0 0
    %3325 = vmatpush1.bf16.msra.mxu0 %v2728
    %3326 = vmatprep.subr.bf16.mxu0 0
    %3327 = vmatpush1.bf16.msra.mxu0 %v2729
    %3328 = vmatprep.subr.bf16.mxu0 0
    %3329 = vmatpush1.bf16.msra.mxu0 %v2730
    %3330 = vmatprep.subr.bf16.mxu0 0
    %3331 = vmatpush1.bf16.msra.mxu0 %v2731
    %3332 = vmatprep.mubr.bf16.mxu0 %v1106
    %3333 = vmatmul.mubr.bf16.gmra.mrb[0].mxu0 %v1105
    %v3334 = vpop.f32.mrb[0].mxu0
    %v3335 = vadd.f32 %v3295, %v3334
    %v3336 = vpop.f32.mrb[0].mxu0
    %v3337 = vpop.f32.mrb[0].mxu0
    %v3338 = vpop.f32.mrb[0].mxu0
    %3339 = vdwg.mxu0
    %3340 = vmatprep.subr.bf16.mxu0 0
    %3341 = vmatpush1.bf16.msra.mxu0 %v2732
    %3342 = vmatprep.subr.bf16.mxu0 0
    %3343 = vmatpush1.bf16.msra.mxu0 %v2733
    %3344 = vmatprep.subr.bf16.mxu0 0
    %3345 = vmatpush1.bf16.msra.mxu0 %v2734
    %3346 = vmatprep.subr.bf16.mxu0 0
    %3347 = vmatpush1.bf16.msra.mxu0 %v2735
    %3348 = vmatprep.subr.bf16.mxu0 0
    %3349 = vmatpush1.bf16.msra.mxu0 %v2736
    %3350 = vmatprep.subr.bf16.mxu0 0
    %3351 = vmatpush1.bf16.msra.mxu0 %v2737
    %3352 = vmatprep.subr.bf16.mxu0 0
    %3353 = vmatpush1.bf16.msra.mxu0 %v2738
    %3354 = vmatprep.subr.bf16.mxu0 0
    %3355 = vmatpush1.bf16.msra.mxu0 %v2739
    %3356 = vmatprep.subr.bf16.mxu0 0
    %3357 = vmatpush1.bf16.msra.mxu0 %v2740
    %3358 = vmatprep.subr.bf16.mxu0 0
    %3359 = vmatpush1.bf16.msra.mxu0 %v2741
    %3360 = vmatprep.subr.bf16.mxu0 0
    %3361 = vmatpush1.bf16.msra.mxu0 %v2742
    %3362 = vmatprep.subr.bf16.mxu0 0
    %3363 = vmatpush1.bf16.msra.mxu0 %v2743
    %3364 = vmatprep.subr.bf16.mxu0 0
    %3365 = vmatpush1.bf16.msra.mxu0 %v2744
    %3366 = vmatprep.subr.bf16.mxu0 0
    %3367 = vmatpush1.bf16.msra.mxu0 %v2745
    %3368 = vmatprep.subr.bf16.mxu0 0
    %3369 = vmatpush1.bf16.msra.mxu0 %v2746
    %3370 = vmatprep.subr.bf16.mxu0 0
    %3371 = vmatpush1.bf16.msra.mxu0 %v2747
    %3372 = vmatprep.mubr.bf16.mxu0 %v1108
    %3373 = vmatmul.mubr.bf16.gmra.mrb[0].mxu0 %v1107
    %v3374 = vpop.f32.mrb[0].mxu0
    %v3375 = vadd.f32 %v3335, %v3374
    %v3376 = vpop.f32.mrb[0].mxu0
    %v3377 = vpop.f32.mrb[0].mxu0
    %v3378 = vpop.f32.mrb[0].mxu0
    %3379 = vdwg.mxu0
    %3380 = vmatprep.subr.bf16.mxu0 0
    %3381 = vmatpush1.bf16.msra.mxu0 %v2748
    %3382 = vmatprep.subr.bf16.mxu0 0
    %3383 = vmatpush1.bf16.msra.mxu0 %v2749
    %3384 = vmatprep.subr.bf16.mxu0 0
    %3385 = vmatpush1.bf16.msra.mxu0 %v2750
    %3386 = vmatprep.subr.bf16.mxu0 0
    %3387 = vmatpush1.bf16.msra.mxu0 %v2751
    %3388 = vmatprep.subr.bf16.mxu0 0
    %3389 = vmatpush1.bf16.msra.mxu0 %v2752
    %3390 = vmatprep.subr.bf16.mxu0 0
    %3391 = vmatpush1.bf16.msra.mxu0 %v2753
    %3392 = vmatprep.subr.bf16.mxu0 0
    %3393 = vmatpush1.bf16.msra.mxu0 %v2754
    %3394 = vmatprep.subr.bf16.mxu0 0
    %3395 = vmatpush1.bf16.msra.mxu0 %v2755
    %3396 = vmatprep.subr.bf16.mxu0 0
    %3397 = vmatpush1.bf16.msra.mxu0 %v2756
    %3398 = vmatprep.subr.bf16.mxu0 0
    %3399 = vmatpush1.bf16.msra.mxu0 %v2757
    %3400 = vmatprep.subr.bf16.mxu0 0
    %3401 = vmatpush1.bf16.msra.mxu0 %v2758
    %3402 = vmatprep.subr.bf16.mxu0 0
    %3403 = vmatpush1.bf16.msra.mxu0 %v2759
    %3404 = vmatprep.subr.bf16.mxu0 0
    %3405 = vmatpush1.bf16.msra.mxu0 %v2760
    %3406 = vmatprep.subr.bf16.mxu0 0
    %3407 = vmatpush1.bf16.msra.mxu0 %v2761
    %3408 = vmatprep.subr.bf16.mxu0 0
    %3409 = vmatpush1.bf16.msra.mxu0 %v2762
    %3410 = vmatprep.subr.bf16.mxu0 0
    %3411 = vmatpush1.bf16.msra.mxu0 %v2763
    %3412 = vmatprep.mubr.bf16.mxu0 %v1110
    %3413 = vmatmul.mubr.bf16.gmra.mrb[0].mxu0 %v1109
    %v3414 = vpop.f32.mrb[0].mxu0
    %v3415 = vadd.f32 %v3375, %v3414
    %v3416 = vpop.f32.mrb[0].mxu0
    %v3417 = vpop.f32.mrb[0].mxu0
    %v3418 = vpop.f32.mrb[0].mxu0
    %3419 = vdwg.mxu0
    %3420 = vmatprep.subr.bf16.mxu0 0
    %3421 = vmatpush1.bf16.msra.mxu0 %v2764
    %3422 = vmatprep.subr.bf16.mxu0 0
    %3423 = vmatpush1.bf16.msra.mxu0 %v2765
    %3424 = vmatprep.subr.bf16.mxu0 0
    %3425 = vmatpush1.bf16.msra.mxu0 %v2766
    %3426 = vmatprep.subr.bf16.mxu0 0
    %3427 = vmatpush1.bf16.msra.mxu0 %v2767
    %3428 = vmatprep.subr.bf16.mxu0 0
    %3429 = vmatpush1.bf16.msra.mxu0 %v2768
    %3430 = vmatprep.subr.bf16.mxu0 0
    %3431 = vmatpush1.bf16.msra.mxu0 %v2769
    %3432 = vmatprep.subr.bf16.mxu0 0
    %3433 = vmatpush1.bf16.msra.mxu0 %v2770
    %3434 = vmatprep.subr.bf16.mxu0 0
    %3435 = vmatpush1.bf16.msra.mxu0 %v2771
    %3436 = vmatprep.subr.bf16.mxu0 0
    %3437 = vmatpush1.bf16.msra.mxu0 %v2772
    %3438 = vmatprep.subr.bf16.mxu0 0
    %3439 = vmatpush1.bf16.msra.mxu0 %v2773
    %3440 = vmatprep.subr.bf16.mxu0 0
    %3441 = vmatpush1.bf16.msra.mxu0 %v2774
    %3442 = vmatprep.subr.bf16.mxu0 0
    %3443 = vmatpush1.bf16.msra.mxu0 %v2775
    %3444 = vmatprep.subr.bf16.mxu0 0
    %3445 = vmatpush1.bf16.msra.mxu0 %v2776
    %3446 = vmatprep.subr.bf16.mxu0 0
    %3447 = vmatpush1.bf16.msra.mxu0 %v2777
    %3448 = vmatprep.subr.bf16.mxu0 0
    %3449 = vmatpush1.bf16.msra.mxu0 %v2778
    %3450 = vmatprep.subr.bf16.mxu0 0
    %3451 = vmatpush1.bf16.msra.mxu0 %v2779
    %3452 = vmatprep.mubr.bf16.mxu0 %v1112
    %3453 = vmatmul.mubr.bf16.gmra.mrb[0].mxu0 %v1111
    %v3454 = vpop.f32.mrb[0].mxu0
    %v3455 = vadd.f32 %v3415, %v3454
    %v3456 = vpop.f32.mrb[0].mxu0
    %v3457 = vpop.f32.mrb[0].mxu0
    %v3458 = vpop.f32.mrb[0].mxu0
    %3459 = vdwg.mxu0
    %3460 = vmatprep.subr.bf16.mxu0 0
    %3461 = vmatpush1.bf16.msra.mxu0 %v2780
    %3462 = vmatprep.subr.bf16.mxu0 0
    %3463 = vmatpush1.bf16.msra.mxu0 %v2781
    %3464 = vmatprep.subr.bf16.mxu0 0
    %3465 = vmatpush1.bf16.msra.mxu0 %v2782
    %3466 = vmatprep.subr.bf16.mxu0 0
    %3467 = vmatpush1.bf16.msra.mxu0 %v2783
    %3468 = vmatprep.subr.bf16.mxu0 0
    %3469 = vmatpush1.bf16.msra.mxu0 %v2784
    %3470 = vmatprep.subr.bf16.mxu0 0
    %3471 = vmatpush1.bf16.msra.mxu0 %v2785
    %3472 = vmatprep.subr.bf16.mxu0 0
    %3473 = vmatpush1.bf16.msra.mxu0 %v2786
    %3474 = vmatprep.subr.bf16.mxu0 0
    %3475 = vmatpush1.bf16.msra.mxu0 %v2787
    %3476 = vmatprep.subr.bf16.mxu0 0
    %3477 = vmatpush1.bf16.msra.mxu0 %v2788
    %3478 = vmatprep.subr.bf16.mxu0 0
    %3479 = vmatpush1.bf16.msra.mxu0 %v2789
    %3480 = vmatprep.subr.bf16.mxu0 0
    %3481 = vmatpush1.bf16.msra.mxu0 %v2790
    %3482 = vmatprep.subr.bf16.mxu0 0
    %3483 = vmatpush1.bf16.msra.mxu0 %v2791
    %3484 = vmatprep.subr.bf16.mxu0 0
    %3485 = vmatpush1.bf16.msra.mxu0 %v2792
    %3486 = vmatprep.subr.bf16.mxu0 0
    %3487 = vmatpush1.bf16.msra.mxu0 %v2793
    %3488 = vmatprep.subr.bf16.mxu0 0
    %3489 = vmatpush1.bf16.msra.mxu0 %v2794
    %3490 = vmatprep.subr.bf16.mxu0 0
    %3491 = vmatpush1.bf16.msra.mxu0 %v2795
    %3492 = vmatprep.mubr.bf16.mxu0 %v1114
    %3493 = vmatmul.mubr.bf16.gmra.mrb[0].mxu0 %v1113
    %v3494 = vpop.f32.mrb[0].mxu0
    %v3495 = vadd.f32 %v3455, %v3494
    %v3496 = vpop.f32.mrb[0].mxu0
    %v3497 = vpop.f32.mrb[0].mxu0
    %v3498 = vpop.f32.mrb[0].mxu0
    %3499 = vdwg.mxu0
    %3500 = vmatprep.subr.bf16.mxu0 0
    %3501 = vmatpush1.bf16.msra.mxu0 %v2796
    %3502 = vmatprep.subr.bf16.mxu0 0
    %3503 = vmatpush1.bf16.msra.mxu0 %v2797
    %3504 = vmatprep.subr.bf16.mxu0 0
    %3505 = vmatpush1.bf16.msra.mxu0 %v2798
    %3506 = vmatprep.subr.bf16.mxu0 0
    %3507 = vmatpush1.bf16.msra.mxu0 %v2799
    %3508 = vmatprep.subr.bf16.mxu0 0
    %3509 = vmatpush1.bf16.msra.mxu0 %v2800
    %3510 = vmatprep.subr.bf16.mxu0 0
    %3511 = vmatpush1.bf16.msra.mxu0 %v2801
    %3512 = vmatprep.subr.bf16.mxu0 0
    %3513 = vmatpush1.bf16.msra.mxu0 %v2802
    %3514 = vmatprep.subr.bf16.mxu0 0
    %3515 = vmatpush1.bf16.msra.mxu0 %v2803
    %3516 = vmatprep.subr.bf16.mxu0 0
    %3517 = vmatpush1.bf16.msra.mxu0 %v2804
    %3518 = vmatprep.subr.bf16.mxu0 0
    %3519 = vmatpush1.bf16.msra.mxu0 %v2805
    %3520 = vmatprep.subr.bf16.mxu0 0
    %3521 = vmatpush1.bf16.msra.mxu0 %v2806
    %3522 = vmatprep.subr.bf16.mxu0 0
    %3523 = vmatpush1.bf16.msra.mxu0 %v2807
    %3524 = vmatprep.subr.bf16.mxu0 0
    %3525 = vmatpush1.bf16.msra.mxu0 %v2808
    %3526 = vmatprep.subr.bf16.mxu0 0
    %3527 = vmatpush1.bf16.msra.mxu0 %v2809
    %3528 = vmatprep.subr.bf16.mxu0 0
    %3529 = vmatpush1.bf16.msra.mxu0 %v2810
    %3530 = vmatprep.subr.bf16.mxu0 0
    %3531 = vmatpush1.bf16.msra.mxu0 %v2811
    %3532 = vmatprep.mubr.bf16.mxu0 %v1116
    %3533 = vmatmul.mubr.bf16.gmra.mrb[0].mxu0 %v1115
    %v3534 = vpop.f32.mrb[0].mxu0
    %v3535 = vadd.f32 %v3495, %v3534
    %v3536 = vpop.f32.mrb[0].mxu0
    %v3537 = vpop.f32.mrb[0].mxu0
    %v3538 = vpop.f32.mrb[0].mxu0
    %3539 = vdwg.mxu0
    %3540 = vmatprep.subr.bf16.mxu0 0
    %3541 = vmatpush1.bf16.msra.mxu0 %v2812
    %3542 = vmatprep.subr.bf16.mxu0 0
    %3543 = vmatpush1.bf16.msra.mxu0 %v2813
    %3544 = vmatprep.subr.bf16.mxu0 0
    %3545 = vmatpush1.bf16.msra.mxu0 %v2814
    %3546 = vmatprep.subr.bf16.mxu0 0
    %3547 = vmatpush1.bf16.msra.mxu0 %v2815
    %3548 = vmatprep.subr.bf16.mxu0 0
    %3549 = vmatpush1.bf16.msra.mxu0 %v2816
    %3550 = vmatprep.subr.bf16.mxu0 0
    %3551 = vmatpush1.bf16.msra.mxu0 %v2817
    %3552 = vmatprep.subr.bf16.mxu0 0
    %3553 = vmatpush1.bf16.msra.mxu0 %v2818
    %3554 = vmatprep.subr.bf16.mxu0 0
    %3555 = vmatpush1.bf16.msra.mxu0 %v2819
    %3556 = vmatprep.subr.bf16.mxu0 0
    %3557 = vmatpush1.bf16.msra.mxu0 %v2820
    %3558 = vmatprep.subr.bf16.mxu0 0
    %3559 = vmatpush1.bf16.msra.mxu0 %v2821
    %3560 = vmatprep.subr.bf16.mxu0 0
    %3561 = vmatpush1.bf16.msra.mxu0 %v2822
    %3562 = vmatprep.subr.bf16.mxu0 0
    %3563 = vmatpush1.bf16.msra.mxu0 %v2823
    %3564 = vmatprep.subr.bf16.mxu0 0
    %3565 = vmatpush1.bf16.msra.mxu0 %v2824
    %3566 = vmatprep.subr.bf16.mxu0 0
    %3567 = vmatpush1.bf16.msra.mxu0 %v2825
    %3568 = vmatprep.subr.bf16.mxu0 0
    %3569 = vmatpush1.bf16.msra.mxu0 %v2826
    %3570 = vmatprep.subr.bf16.mxu0 0
    %3571 = vmatpush1.bf16.msra.mxu0 %v2827
    %3572 = vmatprep.mubr.bf16.mxu0 %v1118
    %3573 = vmatmul.mubr.bf16.gmra.mrb[0].mxu0 %v1117
    %v3574 = vpop.f32.mrb[0].mxu0
    %v3575 = vadd.f32 %v3535, %v3574
    %v3576 = vpop.f32.mrb[0].mxu0
    %v3577 = vpop.f32.mrb[0].mxu0
    %v3578 = vpop.f32.mrb[0].mxu0
    %3579 = vdwg.mxu0
    %3580 = vmatprep.subr.bf16.mxu0 0
    %3581 = vmatpush1.bf16.msra.mxu0 %v2828
    %3582 = vmatprep.subr.bf16.mxu0 0
    %3583 = vmatpush1.bf16.msra.mxu0 %v2829
    %3584 = vmatprep.subr.bf16.mxu0 0
    %3585 = vmatpush1.bf16.msra.mxu0 %v2830
    %3586 = vmatprep.subr.bf16.mxu0 0
    %3587 = vmatpush1.bf16.msra.mxu0 %v2831
    %3588 = vmatprep.subr.bf16.mxu0 0
    %3589 = vmatpush1.bf16.msra.mxu0 %v2832
    %3590 = vmatprep.subr.bf16.mxu0 0
    %3591 = vmatpush1.bf16.msra.mxu0 %v2833
    %3592 = vmatprep.subr.bf16.mxu0 0
    %3593 = vmatpush1.bf16.msra.mxu0 %v2834
    %3594 = vmatprep.subr.bf16.mxu0 0
    %3595 = vmatpush1.bf16.msra.mxu0 %v2835
    %3596 = vmatprep.subr.bf16.mxu0 0
    %3597 = vmatpush1.bf16.msra.mxu0 %v2836
    %3598 = vmatprep.subr.bf16.mxu0 0
    %3599 = vmatpush1.bf16.msra.mxu0 %v2837
    %3600 = vmatprep.subr.bf16.mxu0 0
    %3601 = vmatpush1.bf16.msra.mxu0 %v2838
    %3602 = vmatprep.subr.bf16.mxu0 0
    %3603 = vmatpush1.bf16.msra.mxu0 %v2839
    %3604 = vmatprep.subr.bf16.mxu0 0
    %3605 = vmatpush1.bf16.msra.mxu0 %v2840
    %3606 = vmatprep.subr.bf16.mxu0 0
    %3607 = vmatpush1.bf16.msra.mxu0 %v2841
    %3608 = vmatprep.subr.bf16.mxu0 0
    %3609 = vmatpush1.bf16.msra.mxu0 %v2842
    %3610 = vmatprep.subr.bf16.mxu0 0
    %3611 = vmatpush1.bf16.msra.mxu0 %v2843
    %3612 = vmatprep.mubr.bf16.mxu0 %v1120
    %3613 = vmatmul.mubr.bf16.gmra.mrb[0].mxu0 %v1119
    %v3614 = vpop.f32.mrb[0].mxu0
    %v3615 = vadd.f32 %v3575, %v3614
    %v3616 = vpop.f32.mrb[0].mxu0
    %v3617 = vpop.f32.mrb[0].mxu0
    %v3618 = vpop.f32.mrb[0].mxu0
    %3619 = vdwg.mxu0
    %3620 = vmatprep.subr.bf16.mxu0 0
    %3621 = vmatpush1.bf16.msra.mxu0 %v2844
    %3622 = vmatprep.subr.bf16.mxu0 0
    %3623 = vmatpush1.bf16.msra.mxu0 %v2845
    %3624 = vmatprep.subr.bf16.mxu0 0
    %3625 = vmatpush1.bf16.msra.mxu0 %v2846
    %3626 = vmatprep.subr.bf16.mxu0 0
    %3627 = vmatpush1.bf16.msra.mxu0 %v2847
    %3628 = vmatprep.subr.bf16.mxu0 0
    %3629 = vmatpush1.bf16.msra.mxu0 %v2848
    %3630 = vmatprep.subr.bf16.mxu0 0
    %3631 = vmatpush1.bf16.msra.mxu0 %v2849
    %3632 = vmatprep.subr.bf16.mxu0 0
    %3633 = vmatpush1.bf16.msra.mxu0 %v2850
    %3634 = vmatprep.subr.bf16.mxu0 0
    %3635 = vmatpush1.bf16.msra.mxu0 %v2851
    %3636 = vmatprep.subr.bf16.mxu0 0
    %3637 = vmatpush1.bf16.msra.mxu0 %v2852
    %3638 = vmatprep.subr.bf16.mxu0 0
    %3639 = vmatpush1.bf16.msra.mxu0 %v2853
    %3640 = vmatprep.subr.bf16.mxu0 0
    %3641 = vmatpush1.bf16.msra.mxu0 %v2854
    %3642 = vmatprep.subr.bf16.mxu0 0
    %3643 = vmatpush1.bf16.msra.mxu0 %v2855
    %3644 = vmatprep.subr.bf16.mxu0 0
    %3645 = vmatpush1.bf16.msra.mxu0 %v2856
    %3646 = vmatprep.subr.bf16.mxu0 0
    %3647 = vmatpush1.bf16.msra.mxu0 %v2857
    %3648 = vmatprep.subr.bf16.mxu0 0
    %3649 = vmatpush1.bf16.msra.mxu0 %v2858
    %3650 = vmatprep.subr.bf16.mxu0 0
    %3651 = vmatpush1.bf16.msra.mxu0 %v2859
    %3652 = vmatprep.mubr.bf16.mxu0 %v1122
    %3653 = vmatmul.mubr.bf16.gmra.mrb[0].mxu0 %v1121
    %v3654 = vpop.f32.mrb[0].mxu0
    %v3655 = vadd.f32 %v3615, %v3654
    %v3656 = vpop.f32.mrb[0].mxu0
    %v3657 = vpop.f32.mrb[0].mxu0
    %v3658 = vpop.f32.mrb[0].mxu0
    %3659 = vdwg.mxu0
    %3660 = vmatprep.subr.bf16.mxu0 0
    %3661 = vmatpush1.bf16.msra.mxu0 %v2860
    %3662 = vmatprep.subr.bf16.mxu0 0
    %3663 = vmatpush1.bf16.msra.mxu0 %v2861
    %3664 = vmatprep.subr.bf16.mxu0 0
    %3665 = vmatpush1.bf16.msra.mxu0 %v2862
    %3666 = vmatprep.subr.bf16.mxu0 0
    %3667 = vmatpush1.bf16.msra.mxu0 %v2863
    %3668 = vmatprep.subr.bf16.mxu0 0
    %3669 = vmatpush1.bf16.msra.mxu0 %v2864
    %3670 = vmatprep.subr.bf16.mxu0 0
    %3671 = vmatpush1.bf16.msra.mxu0 %v2865
    %3672 = vmatprep.subr.bf16.mxu0 0
    %3673 = vmatpush1.bf16.msra.mxu0 %v2866
    %3674 = vmatprep.subr.bf16.mxu0 0
    %3675 = vmatpush1.bf16.msra.mxu0 %v2867
    %3676 = vmatprep.subr.bf16.mxu0 0
    %3677 = vmatpush1.bf16.msra.mxu0 %v2868
    %3678 = vmatprep.subr.bf16.mxu0 0
    %3679 = vmatpush1.bf16.msra.mxu0 %v2869
    %3680 = vmatprep.subr.bf16.mxu0 0
    %3681 = vmatpush1.bf16.msra.mxu0 %v2870
    %3682 = vmatprep.subr.bf16.mxu0 0
    %3683 = vmatpush1.bf16.msra.mxu0 %v2871
    %3684 = vmatprep.subr.bf16.mxu0 0
    %3685 = vmatpush1.bf16.msra.mxu0 %v2872
    %3686 = vmatprep.subr.bf16.mxu0 0
    %3687 = vmatpush1.bf16.msra.mxu0 %v2873
    %3688 = vmatprep.subr.bf16.mxu0 0
    %3689 = vmatpush1.bf16.msra.mxu0 %v2874
    %3690 = vmatprep.subr.bf16.mxu0 0
    %3691 = vmatpush1.bf16.msra.mxu0 %v2875
    %3692 = vmatprep.mubr.bf16.mxu0 %v1124
    %3693 = vmatmul.mubr.bf16.gmra.mrb[0].mxu0 %v1123
    %v3694 = vpop.f32.mrb[0].mxu0
    %v3695 = vadd.f32 %v3655, %v3694
    %v3696 = vpop.f32.mrb[0].mxu0
    %v3697 = vpop.f32.mrb[0].mxu0
    %v3698 = vpop.f32.mrb[0].mxu0
    %3699 = vdwg.mxu0
    %3700 = vmatprep.subr.bf16.mxu0 0
    %3701 = vmatpush1.bf16.msra.mxu0 %v2876
    %3702 = vmatprep.subr.bf16.mxu0 0
    %3703 = vmatpush1.bf16.msra.mxu0 %v2877
    %3704 = vmatprep.subr.bf16.mxu0 0
    %3705 = vmatpush1.bf16.msra.mxu0 %v2878
    %3706 = vmatprep.subr.bf16.mxu0 0
    %3707 = vmatpush1.bf16.msra.mxu0 %v2879
    %3708 = vmatprep.subr.bf16.mxu0 0
    %3709 = vmatpush1.bf16.msra.mxu0 %v2880
    %3710 = vmatprep.subr.bf16.mxu0 0
    %3711 = vmatpush1.bf16.msra.mxu0 %v2881
    %3712 = vmatprep.subr.bf16.mxu0 0
    %3713 = vmatpush1.bf16.msra.mxu0 %v2882
    %3714 = vmatprep.subr.bf16.mxu0 0
    %3715 = vmatpush1.bf16.msra.mxu0 %v2883
    %3716 = vmatprep.subr.bf16.mxu0 0
    %3717 = vmatpush1.bf16.msra.mxu0 %v2884
    %3718 = vmatprep.subr.bf16.mxu0 0
    %3719 = vmatpush1.bf16.msra.mxu0 %v2885
    %3720 = vmatprep.subr.bf16.mxu0 0
    %3721 = vmatpush1.bf16.msra.mxu0 %v2886
    %3722 = vmatprep.subr.bf16.mxu0 0
    %3723 = vmatpush1.bf16.msra.mxu0 %v2887
    %3724 = vmatprep.subr.bf16.mxu0 0
    %3725 = vmatpush1.bf16.msra.mxu0 %v2888
    %3726 = vmatprep.subr.bf16.mxu0 0
    %3727 = vmatpush1.bf16.msra.mxu0 %v2889
    %3728 = vmatprep.subr.bf16.mxu0 0
    %3729 = vmatpush1.bf16.msra.mxu0 %v2890
    %3730 = vmatprep.subr.bf16.mxu0 0
    %3731 = vmatpush1.bf16.msra.mxu0 %v2891
    %3732 = vmatprep.mubr.bf16.mxu0 %v1126
    %3733 = vmatmul.mubr.bf16.gmra.mrb[0].mxu0 %v1125
    %v3734 = vpop.f32.mrb[0].mxu0
    %v3735 = vadd.f32 %v3695, %v3734
    %v3736 = vpop.f32.mrb[0].mxu0
    %v3737 = vpop.f32.mrb[0].mxu0
    %v3738 = vpop.f32.mrb[0].mxu0
    %3739 = vdwg.mxu0
    %3740 = vmatprep.subr.bf16.mxu0 0
    %3741 = vmatpush1.bf16.msra.mxu0 %v2892
    %3742 = vmatprep.subr.bf16.mxu0 0
    %3743 = vmatpush1.bf16.msra.mxu0 %v2893
    %3744 = vmatprep.subr.bf16.mxu0 0
    %3745 = vmatpush1.bf16.msra.mxu0 %v2894
    %3746 = vmatprep.subr.bf16.mxu0 0
    %3747 = vmatpush1.bf16.msra.mxu0 %v2895
    %3748 = vmatprep.subr.bf16.mxu0 0
    %3749 = vmatpush1.bf16.msra.mxu0 %v2896
    %3750 = vmatprep.subr.bf16.mxu0 0
    %3751 = vmatpush1.bf16.msra.mxu0 %v2897
    %3752 = vmatprep.subr.bf16.mxu0 0
    %3753 = vmatpush1.bf16.msra.mxu0 %v2898
    %3754 = vmatprep.subr.bf16.mxu0 0
    %3755 = vmatpush1.bf16.msra.mxu0 %v2899
    %3756 = vmatprep.subr.bf16.mxu0 0
    %3757 = vmatpush1.bf16.msra.mxu0 %v2900
    %3758 = vmatprep.subr.bf16.mxu0 0
    %3759 = vmatpush1.bf16.msra.mxu0 %v2901
    %3760 = vmatprep.subr.bf16.mxu0 0
    %3761 = vmatpush1.bf16.msra.mxu0 %v2902
    %3762 = vmatprep.subr.bf16.mxu0 0
    %3763 = vmatpush1.bf16.msra.mxu0 %v2903
    %3764 = vmatprep.subr.bf16.mxu0 0
    %3765 = vmatpush1.bf16.msra.mxu0 %v2904
    %3766 = vmatprep.subr.bf16.mxu0 0
    %3767 = vmatpush1.bf16.msra.mxu0 %v2905
    %3768 = vmatprep.subr.bf16.mxu0 0
    %3769 = vmatpush1.bf16.msra.mxu0 %v2906
    %3770 = vmatprep.subr.bf16.mxu0 0
    %3771 = vmatpush1.bf16.msra.mxu0 %v2907
    %3772 = vmatprep.mubr.bf16.mxu0 %v1128
    %3773 = vmatmul.mubr.bf16.gmra.mrb[0].mxu0 %v1127
    %v3774 = vpop.f32.mrb[0].mxu0
    %v3775 = vadd.f32 %v3735, %v3774
    %v3776 = vpop.f32.mrb[0].mxu0
    %v3777 = vpop.f32.mrb[0].mxu0
    %v3778 = vpop.f32.mrb[0].mxu0
    %3779 = vdwg.mxu0
    %3780 = vmatprep.subr.bf16.mxu0 0
    %3781 = vmatpush1.bf16.msra.mxu0 %v2908
    %3782 = vmatprep.subr.bf16.mxu0 0
    %3783 = vmatpush1.bf16.msra.mxu0 %v2909
    %3784 = vmatprep.subr.bf16.mxu0 0
    %3785 = vmatpush1.bf16.msra.mxu0 %v2910
    %3786 = vmatprep.subr.bf16.mxu0 0
    %3787 = vmatpush1.bf16.msra.mxu0 %v2911
    %3788 = vmatprep.subr.bf16.mxu0 0
    %3789 = vmatpush1.bf16.msra.mxu0 %v2912
    %3790 = vmatprep.subr.bf16.mxu0 0
    %3791 = vmatpush1.bf16.msra.mxu0 %v2913
    %3792 = vmatprep.subr.bf16.mxu0 0
    %3793 = vmatpush1.bf16.msra.mxu0 %v2914
    %3794 = vmatprep.subr.bf16.mxu0 0
    %3795 = vmatpush1.bf16.msra.mxu0 %v2915
    %3796 = vmatprep.subr.bf16.mxu0 0
    %3797 = vmatpush1.bf16.msra.mxu0 %v2916
    %3798 = vmatprep.subr.bf16.mxu0 0
    %3799 = vmatpush1.bf16.msra.mxu0 %v2917
    %3800 = vmatprep.subr.bf16.mxu0 0
    %3801 = vmatpush1.bf16.msra.mxu0 %v2918
    %3802 = vmatprep.subr.bf16.mxu0 0
    %3803 = vmatpush1.bf16.msra.mxu0 %v2919
    %3804 = vmatprep.subr.bf16.mxu0 0
    %3805 = vmatpush1.bf16.msra.mxu0 %v2920
    %3806 = vmatprep.subr.bf16.mxu0 0
    %3807 = vmatpush1.bf16.msra.mxu0 %v2921
    %3808 = vmatprep.subr.bf16.mxu0 0
    %3809 = vmatpush1.bf16.msra.mxu0 %v2922
    %3810 = vmatprep.subr.bf16.mxu0 0
    %3811 = vmatpush1.bf16.msra.mxu0 %v2923
    %3812 = vmatprep.mubr.bf16.mxu0 %v1130
    %3813 = vmatmul.mubr.bf16.gmra.mrb[0].mxu0 %v1129
    %v3814 = vpop.f32.mrb[0].mxu0
    %v3815 = vadd.f32 %v3775, %v3814
    %v3816 = vpop.f32.mrb[0].mxu0
    %v3817 = vpop.f32.mrb[0].mxu0
    %v3818 = vpop.f32.mrb[0].mxu0
    %3819 = vdwg.mxu0
    %3820 = vst [vmem:[#allocation7] sm:$0x1] %v3815
    // Predicated region
    $region26: #{model_forward.1} parent=1 // pred_check
      _
    $region27: #{model_forward.1} parent=1 // pred_check_branch
      %3822 = sbr.rel (0) target = $region29
    $region28: #{model_forward.1} parent=1 // pred_region
      %s3824 = ssub.s32 16, 16
      %3825 = vsyncadd [#allocation4], %s3824
      %s3827 = sshll.u32 [#allocation7], 4
      %s3828 = int_to_ptr.vmem [resolvable:$true] %s3827
      %3830 = dma.vmem_to_hbm [thread:$0]  %s3828, 16, %s4, [#allocation4]
    $region29: #{model_forward.1} parent=1 // pred_fallthru
      _
    // Predicated region
    $region30: #{model_forward.1} parent=1 // pred_check
      _
    $region31: #{model_forward.1} parent=1 // pred_check_branch
      %3832 = sbr.rel (0) target = $region33
    $region32: #{model_forward.1} parent=1 // pred_region
      %3833 = dma.done [#allocation4], 16
    $region33: #{model_forward.1} parent=1 // pred_fallthru
      _
    %3834 = vsyncpa [#allocation3], 1
    %3835 = vsyncpa [#allocation6], 1
    %3836 = vsyncpa [#allocation4], 1

</llo_original>
